<compile_context>
chip_gen: v5e
topology: v5e:2x2
jax: 0.10.0
libtpu: 0.0.40
codegen_flags: <defaults>
</compile_context>

<pallas_src>
import jax
import jax.numpy as jnp
from jax.experimental import pallas as pl
from jax.experimental.pallas import tpu as pltpu


def _round_up(n, m):
    return ((n + m - 1) // m) * m


# ----------------------------------------------------------------------------- #
# Kernel: full forward chain (encoder -> decoder1 -> encoder -> decoder2)
# on one batch tile.
#   w_mid layers  : [enc L1, enc L2, dec1 L0, dec1 L1, dec2 L0, dec2 L1]
#   b_narrow rows : [enc L0, enc L1, enc L2, dec1 L0, dec1 L1, dec2 L0, dec2 L1]
#   w_last / b_wide: [dec1 L2, dec2 L2]
# ----------------------------------------------------------------------------- #
def usad_kernel(x_ref, w_first_ref, w_mid_ref, w_last_ref,
                b_narrow_ref, b_wide_ref, rec1_ref, rec2_ref):
    cdt = w_first_ref.dtype  # MXU compute dtype follows the weight slab (bf16/f32)

    def bias_n(l):  # (1, PH) f32, static row index
        return b_narrow_ref[pl.ds(l, 1), :]

    def matmul(h, w):  # bf16 (or f32) MXU inputs, f32 accumulation
        return jnp.dot(h.astype(cdt), w.astype(cdt),
                       preferred_element_type=jnp.float32)

    def encoder(h_wide):  # (TB, PW) f32 -> (TB, PH) f32 latent
        h = jnp.maximum(matmul(h_wide, w_first_ref[...]) + bias_n(0), 0.0)
        h = jnp.maximum(matmul(h, w_mid_ref[0]) + bias_n(1), 0.0)
        return jnp.maximum(matmul(h, w_mid_ref[1]) + bias_n(2), 0.0)  # final ReLU

    def decoder(z, d):  # z: (TB, PH), d in {0,1} -> (TB, PW)
        mb, bb = 2 + 2 * d, 3 + 2 * d
        h = jnp.maximum(matmul(z, w_mid_ref[mb]) + bias_n(bb), 0.0)
        h = jnp.maximum(matmul(h, w_mid_ref[mb + 1]) + bias_n(bb + 1), 0.0)
        out = matmul(h, w_last_ref[d]) + b_wide_ref[pl.ds(d, 1), :]
        return jax.nn.sigmoid(out)  # final Sigmoid

    x = x_ref[...].astype(jnp.float32)
    z = encoder(x)
    rec1 = decoder(z, 0)
    z_rec1 = encoder(rec1)
    rec2 = decoder(z_rec1, 1)

    # Two lane-dense unmasked stores (no concatenate temporary).
    rec1_ref[...] = rec1.astype(rec1_ref.dtype)
    rec2_ref[...] = rec2.astype(rec2_ref.dtype)


# ----------------------------------------------------------------------------- #
# Parameter construction (mimics torch.nn.Linear default init) — natural shapes.
# Weights are (in, out); biases are (out,).
# ----------------------------------------------------------------------------- #
def make_usad_params(window_size, latent_size, key):
    h1e, h2e = window_size // 2, window_size // 4   # encoder hidden dims
    h1d, h2d = window_size // 4, window_size // 2   # decoder hidden dims

    def lin(k, fan_in, fan_out):
        kw, kb = jax.random.split(k)
        bound = 1.0 / jnp.sqrt(fan_in)
        w = jax.random.uniform(kw, (fan_in, fan_out), jnp.float32, -bound, bound)
        b = jax.random.uniform(kb, (fan_out,), jnp.float32, -bound, bound)
        return w, b

    keys = jax.random.split(key, 9)
    enc = [lin(keys[0], window_size, h1e),
           lin(keys[1], h1e, h2e),
           lin(keys[2], h2e, latent_size)]
    dec1 = [lin(keys[3], latent_size, h1d),
            lin(keys[4], h1d, h2d),
            lin(keys[5], h2d, window_size)]
    dec2 = [lin(keys[6], latent_size, h1d),
            lin(keys[7], h1d, h2d),
            lin(keys[8], h2d, window_size)]
    return enc, dec1, dec2


def _pack_params(enc, dec1, dec2, PW, PH, w_dtype):
    """Pack the 9 layers into two-width padded slabs."""
    def pad_w(w, r, c):
        out = jnp.zeros((r, c), jnp.float32)
        return out.at[:w.shape[0], :w.shape[1]].set(w)

    def pad_b(b, c):
        out = jnp.zeros((c,), jnp.float32)
        return out.at[:b.shape[0]].set(b)

    mid_layers = [enc[1], enc[2], dec1[0], dec1[1], dec2[0], dec2[1]]
    last_layers = [dec1[2], dec2[2]]
    narrow_bias_layers = [enc[0], enc[1], enc[2], dec1[0], dec1[1], dec2[0], dec2[1]]

    w_first = pad_w(enc[0][0], PW, PH).astype(w_dtype)                      # (PW, PH)
    w_mid = jnp.stack([pad_w(w, PH, PH) for w, _ in mid_layers]).astype(w_dtype)   # (6,PH,PH)
    w_last = jnp.stack([pad_w(w, PH, PW) for w, _ in last_layers]).astype(w_dtype)  # (2,PH,PW)
    b_narrow = jnp.stack([pad_b(b, PH) for _, b in narrow_bias_layers])    # (7, PH) f32
    b_wide = jnp.stack([pad_b(b, PW) for _, b in last_layers])             # (2, PW) f32
    return w_first, w_mid, w_last, b_narrow, b_wide


# ----------------------------------------------------------------------------- #
# Wrapper
# ----------------------------------------------------------------------------- #
def usad_forward(x, enc, dec1, dec2, *, batch_tile=None, use_bf16=True):
    B, W = x.shape
    latent = enc[2][0].shape[1]
    PW = _round_up(W, 128)                        # wide (window-facing) lane width
    PH = _round_up(max(W // 2, latent, 1), 128)   # narrow (hidden/latent) lane width

    if batch_tile is None:
        # Cap at 256 rows (live (TB,128) f32 intermediates <= 32 vregs -> no spill).
        # Do not split small batches: one well-filled tile on single-TC v5e/v6e;
        # v7x only gets a 2-way split once B > 256 (each core still MXU-filled).
        batch_tile = min(256, _round_up(B, 8))
    batch_tile = max(8, _round_up(batch_tile, 8))

    B_pad = _round_up(B, batch_tile)
    x_pad = jnp.zeros((B_pad, PW), x.dtype).at[:B, :W].set(x)

    w_dtype = jnp.bfloat16 if use_bf16 else jnp.float32
    w_first, w_mid, w_last, b_narrow, b_wide = _pack_params(
        enc, dec1, dec2, PW, PH, w_dtype)

    grid = (B_pad // batch_tile,)
    out_dtype = x.dtype
    out_isize = jnp.dtype(out_dtype).itemsize

    def nbytes(a):
        return a.size * jnp.dtype(a.dtype).itemsize

    # ---- Cost estimate from real per-layer padded shapes and dtypes ----
    macs_per_row = 4 * PW * PH + 8 * PH * PH      # 2x encoder + 2x decoder
    cost = pl.CostEstimate(
        flops=int(2 * B_pad * macs_per_row),
        transcendentals=int(2 * B_pad * PW),      # two sigmoids of width PW per row
        bytes_accessed=int(nbytes(x_pad) + nbytes(w_first) + nbytes(w_mid)
                           + nbytes(w_last) + nbytes(b_narrow) + nbytes(b_wide)
                           + 2 * B_pad * PW * out_isize),
    )

    # ---- VMEM budget (double-buffered I/O + resident slabs + f32 temps) ----
    dbl = 2
    slab_bytes = nbytes(w_first) + nbytes(w_mid) + nbytes(w_last) \
        + nbytes(b_narrow) + nbytes(b_wide)
    io_bytes = (dbl * batch_tile * PW * jnp.dtype(x_pad.dtype).itemsize
                + dbl * 2 * batch_tile * PW * out_isize)
    tmp_bytes = 6 * batch_tile * max(PW, PH) * 4   # live f32 intermediates
    est = dbl * slab_bytes + io_bytes + tmp_bytes
    vmem_limit = int(min(64 * 1024 * 1024, max(16 * 1024 * 1024, 1.5 * est)))

    rec1_pad, rec2_pad = pl.pallas_call(
        usad_kernel,
        out_shape=(jax.ShapeDtypeStruct((B_pad, PW), out_dtype),
                   jax.ShapeDtypeStruct((B_pad, PW), out_dtype)),
        grid_spec=pltpu.PrefetchScalarGridSpec(
            num_scalar_prefetch=0,
            grid=grid,
            in_specs=[
                pl.BlockSpec((batch_tile, PW), lambda i: (i, 0)),    # x tile
                pl.BlockSpec((PW, PH), lambda i: (0, 0)),            # w_first (resident)
                pl.BlockSpec((6, PH, PH), lambda i: (0, 0, 0)),      # w_mid   (resident)
                pl.BlockSpec((2, PH, PW), lambda i: (0, 0, 0)),      # w_last  (resident)
                pl.BlockSpec((7, PH), lambda i: (0, 0)),             # b_narrow
                pl.BlockSpec((2, PW), lambda i: (0, 0)),             # b_wide
            ],
            out_specs=[
                pl.BlockSpec((batch_tile, PW), lambda i: (i, 0)),    # rec1
                pl.BlockSpec((batch_tile, PW), lambda i: (i, 0)),    # rec2
            ],
        ),
        compiler_params=pltpu.CompilerParams(
            dimension_semantics=("parallel",),
            vmem_limit_bytes=vmem_limit),
        cost_estimate=cost,
    )(x_pad, w_first, w_mid, w_last, b_narrow, b_wide)

    return rec1_pad[:B, :W], rec2_pad[:B, :W]


# ----------------------------------------------------------------------------- #
# Pure-JAX reference (natural shapes, f32) for correctness check
# ----------------------------------------------------------------------------- #
def usad_forward_ref(x, enc, dec1, dec2):
    def encoder(h):
        for w, b in enc:
            h = jnp.maximum(h @ w + b, 0.0)
        return h

    def decoder(h, dec):
        (wa, ba), (wb, bb), (wc, bc) = dec
        h = jnp.maximum(h @ wa + ba, 0.0)
        h = jnp.maximum(h @ wb + bb, 0.0)
        return jax.nn.sigmoid(h @ wc + bc)

    z = encoder(x)
    rec1 = decoder(z, dec1)
    z_rec1 = encoder(rec1)
    rec2 = decoder(z_rec1, dec2)
    return rec1, rec2


if __name__ == "__main__":
    window_size = 64     # in_size of encoder / out_size of decoders
    latent_size = 16
    batch = 64

    key = jax.random.PRNGKey(0)
    kx, kp = jax.random.split(key)
    x = jax.random.uniform(kx, (batch, window_size), jnp.float32)

    enc, dec1, dec2 = make_usad_params(window_size, latent_size, kp)
    ref1, ref2 = usad_forward_ref(x, enc, dec1, dec2)

    # Exact-semantics path (f32 MXU inputs) — tight tolerance.
    r1_f32, r2_f32 = usad_forward(x, enc, dec1, dec2, use_bf16=False)
    jax.block_until_ready((r1_f32, r2_f32))
    assert jnp.allclose(r1_f32, ref1, atol=1e-5, rtol=1e-5), "f32 rec1 mismatch"
    assert jnp.allclose(r2_f32, ref2, atol=1e-5, rtol=1e-5), "f32 rec2 mismatch"

    # Performance path (bf16 MXU inputs, f32 accumulation) — loose tolerance.
    rec1, rec2 = usad_forward(x, enc, dec1, dec2, use_bf16=True)
    jax.block_until_ready((rec1, rec2))
    assert rec1.shape == (batch, window_size) and rec2.shape == (batch, window_size)
    assert jnp.allclose(rec1, ref1, atol=2e-2, rtol=2e-2), "bf16 rec1 mismatch"
    assert jnp.allclose(rec2, ref2, atol=2e-2, rtol=2e-2), "bf16 rec2 mismatch"

    print("KERNEL_OK")
</pallas_src>

<mosaic_0001>
module attributes {stable_mosaic.version = 11 : i64} {
  func.func @usad_kernel(%arg0: i32, %arg1: memref<64x128xf32, #tpu.memory_space<vmem>>, %arg2: memref<128x128xf32, #tpu.memory_space<vmem>>, %arg3: memref<6x128x128xf32, #tpu.memory_space<vmem>>, %arg4: memref<2x128x128xf32, #tpu.memory_space<vmem>>, %arg5: memref<7x128xf32, #tpu.memory_space<vmem>>, %arg6: memref<2x128xf32, #tpu.memory_space<vmem>>, %arg7: memref<64x128xf32, #tpu.memory_space<vmem>>, %arg8: memref<64x128xf32, #tpu.memory_space<vmem>>) attributes {dimension_semantics = [#tpu.dimension_semantics<parallel>], iteration_bounds = array<i64: 1>, scalar_prefetch = 0 : i64, scratch_operands = 0 : i64, tpu.core_type = #tpu.core_type<tc>, window_params = [{transform_indices = @transform_0, window_bounds = array<i64: 64, 128>}, {pipeline_mode = #tpu.pipeline_mode<synchronous>, transform_indices = @transform_1, window_bounds = array<i64: 128, 128>}, {pipeline_mode = #tpu.pipeline_mode<synchronous>, transform_indices = @transform_2, window_bounds = array<i64: 6, 128, 128>}, {pipeline_mode = #tpu.pipeline_mode<synchronous>, transform_indices = @transform_3, window_bounds = array<i64: 2, 128, 128>}, {pipeline_mode = #tpu.pipeline_mode<synchronous>, transform_indices = @transform_4, window_bounds = array<i64: 7, 128>}, {pipeline_mode = #tpu.pipeline_mode<synchronous>, transform_indices = @transform_5, window_bounds = array<i64: 2, 128>}, {transform_indices = @transform_6, window_bounds = array<i64: 64, 128>}, {transform_indices = @transform_7, window_bounds = array<i64: 64, 128>}]} {
    %c0 = arith.constant 0 : index
    %c0_0 = arith.constant 0 : index
    %0 = vector.load %arg1[%c0, %c0_0] : memref<64x128xf32, #tpu.memory_space<vmem>>, vector<64x128xf32>
    %c0_1 = arith.constant 0 : index
    %c0_2 = arith.constant 0 : index
    %1 = vector.load %arg2[%c0_1, %c0_2] : memref<128x128xf32, #tpu.memory_space<vmem>>, vector<128x128xf32>
    %cst = arith.constant dense<0.000000e+00> : vector<64x128xf32>
    %2 = tpu.matmul %0, %1, %cst {dimension_numbers = #tpu.dot_dimension_numbers<[1], [0], [0], [1], [0, 0, 1, 1], [], []>} : vector<64x128xf32>, vector<128x128xf32>, vector<64x128xf32> -> vector<64x128xf32>
    %c0_3 = arith.constant 0 : index
    %c0_4 = arith.constant 0 : index
    %3 = vector.load %arg5[%c0_3, %c0_4] : memref<7x128xf32, #tpu.memory_space<vmem>>, vector<1x128xf32>
    %4 = vector.broadcast %3 : vector<1x128xf32> to vector<64x128xf32>
    %5 = arith.addf %2, %4 : vector<64x128xf32>
    %cst_5 = arith.constant 0.000000e+00 : f32
    %6 = vector.broadcast %cst_5 : f32 to vector<64x128xf32>
    %7 = arith.maximumf %5, %6 : vector<64x128xf32>
    %c0_6 = arith.constant 0 : index
    %c0_7 = arith.constant 0 : index
    %c0_8 = arith.constant 0 : index
    %8 = vector.load %arg3[%c0_6, %c0_7, %c0_8] : memref<6x128x128xf32, #tpu.memory_space<vmem>>, vector<1x128x128xf32>
    %9 = vector.shape_cast %8 : vector<1x128x128xf32> to vector<128x128xf32>
    %cst_9 = arith.constant dense<0.000000e+00> : vector<64x128xf32>
    %10 = tpu.matmul %7, %9, %cst_9 {dimension_numbers = #tpu.dot_dimension_numbers<[1], [0], [0], [1], [0, 0, 1, 1], [], []>} : vector<64x128xf32>, vector<128x128xf32>, vector<64x128xf32> -> vector<64x128xf32>
    %c1 = arith.constant 1 : index
    %c0_10 = arith.constant 0 : index
    %11 = vector.load %arg5[%c1, %c0_10] : memref<7x128xf32, #tpu.memory_space<vmem>>, vector<1x128xf32>
    %12 = vector.broadcast %11 : vector<1x128xf32> to vector<64x128xf32>
    %13 = arith.addf %10, %12 : vector<64x128xf32>
    %cst_11 = arith.constant 0.000000e+00 : f32
    %14 = vector.broadcast %cst_11 : f32 to vector<64x128xf32>
    %15 = arith.maximumf %13, %14 : vector<64x128xf32>
    %c1_12 = arith.constant 1 : index
    %c0_13 = arith.constant 0 : index
    %c0_14 = arith.constant 0 : index
    %16 = vector.load %arg3[%c1_12, %c0_13, %c0_14] : memref<6x128x128xf32, #tpu.memory_space<vmem>>, vector<1x128x128xf32>
    %17 = vector.shape_cast %16 : vector<1x128x128xf32> to vector<128x128xf32>
    %cst_15 = arith.constant dense<0.000000e+00> : vector<64x128xf32>
    %18 = tpu.matmul %15, %17, %cst_15 {dimension_numbers = #tpu.dot_dimension_numbers<[1], [0], [0], [1], [0, 0, 1, 1], [], []>} : vector<64x128xf32>, vector<128x128xf32>, vector<64x128xf32> -> vector<64x128xf32>
    %c2 = arith.constant 2 : index
    %c0_16 = arith.constant 0 : index
    %19 = vector.load %arg5[%c2, %c0_16] : memref<7x128xf32, #tpu.memory_space<vmem>>, vector<1x128xf32>
    %20 = vector.broadcast %19 : vector<1x128xf32> to vector<64x128xf32>
    %21 = arith.addf %18, %20 : vector<64x128xf32>
    %cst_17 = arith.constant 0.000000e+00 : f32
    %22 = vector.broadcast %cst_17 : f32 to vector<64x128xf32>
    %23 = arith.maximumf %21, %22 : vector<64x128xf32>
    %c2_18 = arith.constant 2 : index
    %c0_19 = arith.constant 0 : index
    %c0_20 = arith.constant 0 : index
    %24 = vector.load %arg3[%c2_18, %c0_19, %c0_20] : memref<6x128x128xf32, #tpu.memory_space<vmem>>, vector<1x128x128xf32>
    %25 = vector.shape_cast %24 : vector<1x128x128xf32> to vector<128x128xf32>
    %cst_21 = arith.constant dense<0.000000e+00> : vector<64x128xf32>
    %26 = tpu.matmul %23, %25, %cst_21 {dimension_numbers = #tpu.dot_dimension_numbers<[1], [0], [0], [1], [0, 0, 1, 1], [], []>} : vector<64x128xf32>, vector<128x128xf32>, vector<64x128xf32> -> vector<64x128xf32>
    %c3 = arith.constant 3 : index
    %c0_22 = arith.constant 0 : index
    %27 = vector.load %arg5[%c3, %c0_22] : memref<7x128xf32, #tpu.memory_space<vmem>>, vector<1x128xf32>
    %28 = vector.broadcast %27 : vector<1x128xf32> to vector<64x128xf32>
    %29 = arith.addf %26, %28 : vector<64x128xf32>
    %cst_23 = arith.constant 0.000000e+00 : f32
    %30 = vector.broadcast %cst_23 : f32 to vector<64x128xf32>
    %31 = arith.maximumf %29, %30 : vector<64x128xf32>
    %c3_24 = arith.constant 3 : index
    %c0_25 = arith.constant 0 : index
    %c0_26 = arith.constant 0 : index
    %32 = vector.load %arg3[%c3_24, %c0_25, %c0_26] : memref<6x128x128xf32, #tpu.memory_space<vmem>>, vector<1x128x128xf32>
    %33 = vector.shape_cast %32 : vector<1x128x128xf32> to vector<128x128xf32>
    %cst_27 = arith.constant dense<0.000000e+00> : vector<64x128xf32>
    %34 = tpu.matmul %31, %33, %cst_27 {dimension_numbers = #tpu.dot_dimension_numbers<[1], [0], [0], [1], [0, 0, 1, 1], [], []>} : vector<64x128xf32>, vector<128x128xf32>, vector<64x128xf32> -> vector<64x128xf32>
    %c4 = arith.constant 4 : index
    %c0_28 = arith.constant 0 : index
    %35 = vector.load %arg5[%c4, %c0_28] : memref<7x128xf32, #tpu.memory_space<vmem>>, vector<1x128xf32>
    %36 = vector.broadcast %35 : vector<1x128xf32> to vector<64x128xf32>
    %37 = arith.addf %34, %36 : vector<64x128xf32>
    %cst_29 = arith.constant 0.000000e+00 : f32
    %38 = vector.broadcast %cst_29 : f32 to vector<64x128xf32>
    %39 = arith.maximumf %37, %38 : vector<64x128xf32>
    %c0_30 = arith.constant 0 : index
    %c0_31 = arith.constant 0 : index
    %c0_32 = arith.constant 0 : index
    %40 = vector.load %arg4[%c0_30, %c0_31, %c0_32] : memref<2x128x128xf32, #tpu.memory_space<vmem>>, vector<1x128x128xf32>
    %41 = vector.shape_cast %40 : vector<1x128x128xf32> to vector<128x128xf32>
    %cst_33 = arith.constant dense<0.000000e+00> : vector<64x128xf32>
    %42 = tpu.matmul %39, %41, %cst_33 {dimension_numbers = #tpu.dot_dimension_numbers<[1], [0], [0], [1], [0, 0, 1, 1], [], []>} : vector<64x128xf32>, vector<128x128xf32>, vector<64x128xf32> -> vector<64x128xf32>
    %c0_34 = arith.constant 0 : index
    %c0_35 = arith.constant 0 : index
    %43 = vector.load %arg6[%c0_34, %c0_35] : memref<2x128xf32, #tpu.memory_space<vmem>>, vector<1x128xf32>
    %44 = vector.broadcast %43 : vector<1x128xf32> to vector<64x128xf32>
    %45 = arith.addf %42, %44 : vector<64x128xf32>
    %46 = arith.negf %45 : vector<64x128xf32>
    %47 = math.exp %46 : vector<64x128xf32>
    %cst_36 = arith.constant 1.000000e+00 : f32
    %48 = vector.broadcast %cst_36 : f32 to vector<64x128xf32>
    %49 = arith.addf %48, %47 : vector<64x128xf32>
    %50 = arith.divf %48, %49 : vector<64x128xf32>
    %c0_37 = arith.constant 0 : index
    %c0_38 = arith.constant 0 : index
    %51 = vector.load %arg2[%c0_37, %c0_38] : memref<128x128xf32, #tpu.memory_space<vmem>>, vector<128x128xf32>
    %cst_39 = arith.constant dense<0.000000e+00> : vector<64x128xf32>
    %52 = tpu.matmul %50, %51, %cst_39 {dimension_numbers = #tpu.dot_dimension_numbers<[1], [0], [0], [1], [0, 0, 1, 1], [], []>} : vector<64x128xf32>, vector<128x128xf32>, vector<64x128xf32> -> vector<64x128xf32>
    %c0_40 = arith.constant 0 : index
    %c0_41 = arith.constant 0 : index
    %53 = vector.load %arg5[%c0_40, %c0_41] : memref<7x128xf32, #tpu.memory_space<vmem>>, vector<1x128xf32>
    %54 = vector.broadcast %53 : vector<1x128xf32> to vector<64x128xf32>
    %55 = arith.addf %52, %54 : vector<64x128xf32>
    %cst_42 = arith.constant 0.000000e+00 : f32
    %56 = vector.broadcast %cst_42 : f32 to vector<64x128xf32>
    %57 = arith.maximumf %55, %56 : vector<64x128xf32>
    %c0_43 = arith.constant 0 : index
    %c0_44 = arith.constant 0 : index
    %c0_45 = arith.constant 0 : index
    %58 = vector.load %arg3[%c0_43, %c0_44, %c0_45] : memref<6x128x128xf32, #tpu.memory_space<vmem>>, vector<1x128x128xf32>
    %59 = vector.shape_cast %58 : vector<1x128x128xf32> to vector<128x128xf32>
    %cst_46 = arith.constant dense<0.000000e+00> : vector<64x128xf32>
    %60 = tpu.matmul %57, %59, %cst_46 {dimension_numbers = #tpu.dot_dimension_numbers<[1], [0], [0], [1], [0, 0, 1, 1], [], []>} : vector<64x128xf32>, vector<128x128xf32>, vector<64x128xf32> -> vector<64x128xf32>
    %c1_47 = arith.constant 1 : index
    %c0_48 = arith.constant 0 : index
    %61 = vector.load %arg5[%c1_47, %c0_48] : memref<7x128xf32, #tpu.memory_space<vmem>>, vector<1x128xf32>
    %62 = vector.broadcast %61 : vector<1x128xf32> to vector<64x128xf32>
    %63 = arith.addf %60, %62 : vector<64x128xf32>
    %cst_49 = arith.constant 0.000000e+00 : f32
    %64 = vector.broadcast %cst_49 : f32 to vector<64x128xf32>
    %65 = arith.maximumf %63, %64 : vector<64x128xf32>
    %c1_50 = arith.constant 1 : index
    %c0_51 = arith.constant 0 : index
    %c0_52 = arith.constant 0 : index
    %66 = vector.load %arg3[%c1_50, %c0_51, %c0_52] : memref<6x128x128xf32, #tpu.memory_space<vmem>>, vector<1x128x128xf32>
    %67 = vector.shape_cast %66 : vector<1x128x128xf32> to vector<128x128xf32>
    %cst_53 = arith.constant dense<0.000000e+00> : vector<64x128xf32>
    %68 = tpu.matmul %65, %67, %cst_53 {dimension_numbers = #tpu.dot_dimension_numbers<[1], [0], [0], [1], [0, 0, 1, 1], [], []>} : vector<64x128xf32>, vector<128x128xf32>, vector<64x128xf32> -> vector<64x128xf32>
    %c2_54 = arith.constant 2 : index
    %c0_55 = arith.constant 0 : index
    %69 = vector.load %arg5[%c2_54, %c0_55] : memref<7x128xf32, #tpu.memory_space<vmem>>, vector<1x128xf32>
    %70 = vector.broadcast %69 : vector<1x128xf32> to vector<64x128xf32>
    %71 = arith.addf %68, %70 : vector<64x128xf32>
    %cst_56 = arith.constant 0.000000e+00 : f32
    %72 = vector.broadcast %cst_56 : f32 to vector<64x128xf32>
    %73 = arith.maximumf %71, %72 : vector<64x128xf32>
    %c4_57 = arith.constant 4 : index
    %c0_58 = arith.constant 0 : index
    %c0_59 = arith.constant 0 : index
    %74 = vector.load %arg3[%c4_57, %c0_58, %c0_59] : memref<6x128x128xf32, #tpu.memory_space<vmem>>, vector<1x128x128xf32>
    %75 = vector.shape_cast %74 : vector<1x128x128xf32> to vector<128x128xf32>
    %cst_60 = arith.constant dense<0.000000e+00> : vector<64x128xf32>
    %76 = tpu.matmul %73, %75, %cst_60 {dimension_numbers = #tpu.dot_dimension_numbers<[1], [0], [0], [1], [0, 0, 1, 1], [], []>} : vector<64x128xf32>, vector<128x128xf32>, vector<64x128xf32> -> vector<64x128xf32>
    %c5 = arith.constant 5 : index
    %c0_61 = arith.constant 0 : index
    %77 = vector.load %arg5[%c5, %c0_61] : memref<7x128xf32, #tpu.memory_space<vmem>>, vector<1x128xf32>
    %78 = vector.broadcast %77 : vector<1x128xf32> to vector<64x128xf32>
    %79 = arith.addf %76, %78 : vector<64x128xf32>
    %cst_62 = arith.constant 0.000000e+00 : f32
    %80 = vector.broadcast %cst_62 : f32 to vector<64x128xf32>
    %81 = arith.maximumf %79, %80 : vector<64x128xf32>
    %c5_63 = arith.constant 5 : index
    %c0_64 = arith.constant 0 : index
    %c0_65 = arith.constant 0 : index
    %82 = vector.load %arg3[%c5_63, %c0_64, %c0_65] : memref<6x128x128xf32, #tpu.memory_space<vmem>>, vector<1x128x128xf32>
    %83 = vector.shape_cast %82 : vector<1x128x128xf32> to vector<128x128xf32>
    %cst_66 = arith.constant dense<0.000000e+00> : vector<64x128xf32>
    %84 = tpu.matmul %81, %83, %cst_66 {dimension_numbers = #tpu.dot_dimension_numbers<[1], [0], [0], [1], [0, 0, 1, 1], [], []>} : vector<64x128xf32>, vector<128x128xf32>, vector<64x128xf32> -> vector<64x128xf32>
    %c6 = arith.constant 6 : index
    %c0_67 = arith.constant 0 : index
    %85 = vector.load %arg5[%c6, %c0_67] : memref<7x128xf32, #tpu.memory_space<vmem>>, vector<1x128xf32>
    %86 = vector.broadcast %85 : vector<1x128xf32> to vector<64x128xf32>
    %87 = arith.addf %84, %86 : vector<64x128xf32>
    %cst_68 = arith.constant 0.000000e+00 : f32
    %88 = vector.broadcast %cst_68 : f32 to vector<64x128xf32>
    %89 = arith.maximumf %87, %88 : vector<64x128xf32>
    %c1_69 = arith.constant 1 : index
    %c0_70 = arith.constant 0 : index
    %c0_71 = arith.constant 0 : index
    %90 = vector.load %arg4[%c1_69, %c0_70, %c0_71] : memref<2x128x128xf32, #tpu.memory_space<vmem>>, vector<1x128x128xf32>
    %91 = vector.shape_cast %90 : vector<1x128x128xf32> to vector<128x128xf32>
    %cst_72 = arith.constant dense<0.000000e+00> : vector<64x128xf32>
    %92 = tpu.matmul %89, %91, %cst_72 {dimension_numbers = #tpu.dot_dimension_numbers<[1], [0], [0], [1], [0, 0, 1, 1], [], []>} : vector<64x128xf32>, vector<128x128xf32>, vector<64x128xf32> -> vector<64x128xf32>
    %c1_73 = arith.constant 1 : index
    %c0_74 = arith.constant 0 : index
    %93 = vector.load %arg6[%c1_73, %c0_74] : memref<2x128xf32, #tpu.memory_space<vmem>>, vector<1x128xf32>
    %94 = vector.broadcast %93 : vector<1x128xf32> to vector<64x128xf32>
    %95 = arith.addf %92, %94 : vector<64x128xf32>
    %96 = arith.negf %95 : vector<64x128xf32>
    %97 = math.exp %96 : vector<64x128xf32>
    %cst_75 = arith.constant 1.000000e+00 : f32
    %98 = vector.broadcast %cst_75 : f32 to vector<64x128xf32>
    %99 = arith.addf %98, %97 : vector<64x128xf32>
    %100 = arith.divf %98, %99 : vector<64x128xf32>
    %c0_76 = arith.constant 0 : index
    %c0_77 = arith.constant 0 : index
    %101 = vector.load %arg7[%c0_76, %c0_77] : memref<64x128xf32, #tpu.memory_space<vmem>>, vector<64x128xf32>
    tpu.vector_store %arg7[%c0_76, %c0_77], %50 {strides = array<i32>} : memref<64x128xf32, #tpu.memory_space<vmem>>, vector<64x128xf32>,
    %c0_78 = arith.constant 0 : index
    %c0_79 = arith.constant 0 : index
    %102 = vector.load %arg8[%c0_78, %c0_79] : memref<64x128xf32, #tpu.memory_space<vmem>>, vector<64x128xf32>
    tpu.vector_store %arg8[%c0_78, %c0_79], %100 {strides = array<i32>} : memref<64x128xf32, #tpu.memory_space<vmem>>, vector<64x128xf32>,
    return
  }
  func.func @transform_0(%arg0: i32) -> (i32, i32) {
    %c0_i32 = arith.constant 0 : i32
    %c0_i32_0 = arith.constant 0 : i32
    return %arg0, %c0_i32 : i32, i32
  }
  func.func @transform_1(%arg0: i32) -> (i32, i32) {
    %c0_i32 = arith.constant 0 : i32
    %c0_i32_0 = arith.constant 0 : i32
    %c0_i32_1 = arith.constant 0 : i32
    return %c0_i32, %c0_i32_0 : i32, i32
  }
  func.func @transform_2(%arg0: i32) -> (i32, i32, i32) {
    %c0_i32 = arith.constant 0 : i32
    %c0_i32_0 = arith.constant 0 : i32
    %c0_i32_1 = arith.constant 0 : i32
    %c0_i32_2 = arith.constant 0 : i32
    return %c0_i32, %c0_i32_0, %c0_i32_1 : i32, i32, i32
  }
  func.func @transform_3(%arg0: i32) -> (i32, i32, i32) {
    %c0_i32 = arith.constant 0 : i32
    %c0_i32_0 = arith.constant 0 : i32
    %c0_i32_1 = arith.constant 0 : i32
    %c0_i32_2 = arith.constant 0 : i32
    return %c0_i32, %c0_i32_0, %c0_i32_1 : i32, i32, i32
  }
  func.func @transform_4(%arg0: i32) -> (i32, i32) {
    %c0_i32 = arith.constant 0 : i32
    %c0_i32_0 = arith.constant 0 : i32
    %c0_i32_1 = arith.constant 0 : i32
    return %c0_i32, %c0_i32_0 : i32, i32
  }
  func.func @transform_5(%arg0: i32) -> (i32, i32) {
    %c0_i32 = arith.constant 0 : i32
    %c0_i32_0 = arith.constant 0 : i32
    %c0_i32_1 = arith.constant 0 : i32
    return %c0_i32, %c0_i32_0 : i32, i32
  }
  func.func @transform_6(%arg0: i32) -> (i32, i32) {
    %c0_i32 = arith.constant 0 : i32
    %c0_i32_0 = arith.constant 0 : i32
    return %arg0, %c0_i32 : i32, i32
  }
  func.func @transform_7(%arg0: i32) -> (i32, i32) {
    %c0_i32 = arith.constant 0 : i32
    %c0_i32_0 = arith.constant 0 : i32
    return %arg0, %c0_i32 : i32, i32
  }
}

</mosaic_0001>

<llo_original>
// kernel: tpu_custom_call.1
$region0: #{tpu_custom_call.1}
  #allocation0 [shape = 'u32[]', space=smem, size = 0x4, offset = 0x4, fixed_abs, tag = 'smem constant byte address 0x4 - core index']
  #allocation1 [shape = 'u32[72,128]{1,0:T(1,128)}', space=vmem, size = 0x9000, scoped, tag = 'internal scratch']
  %s0 = inlined_call_operand.hbm [shape: f32[64,128], index: 0, kind: input, shape index: {}]
  %s1 = inlined_call_operand.hbm [shape: f32[128,128], index: 1, kind: input, shape index: {}]
  %s2 = inlined_call_operand.hbm [shape: f32[6,128,128], index: 2, kind: input, shape index: {}]
  %s3 = inlined_call_operand.hbm [shape: f32[2,128,128], index: 3, kind: input, shape index: {}]
  %s4 = inlined_call_operand.hbm [shape: f32[7,128], index: 4, kind: input, shape index: {}]
  %s5 = inlined_call_operand.vmem [shape: f32[2,128], index: 5, kind: input, shape index: {}]
  %s6 = inlined_call_operand.hbm [shape: f32[64,128], index: 6, kind: output, shape index: {0}]
  %s7 = inlined_call_operand.hbm [shape: f32[64,128], index: 7, kind: output, shape index: {1}]
  %8 = xla_tuple %s6, %s7
  %s9 = sld [smem:[#allocation0]]
  $region62: #{tpu_custom_call.1} parent=0
    _
  %s11 = ssub.s32 1, %s9
  %s12 = scalar_select 0, %s11, %s9
  $region1: #{tpu_custom_call.1} parent=0
    #allocation2 [shape = 'u8[32768]{0}', space=vmem, size = 0x8000, scoped, tag = 'input window, operand 0, single buffered']
    #allocation3 [shape = 's32[1]{0}', space=sflag, size = 0x4, scoped, tag = 'scoped memory for tpu_custom_call.1']
    #allocation4 [shape = 's32[1]{0}', space=sflag, size = 0x4, scoped, tag = 'scoped memory for tpu_custom_call.1']
    #allocation5 [shape = 'u8[65536]{0}', space=vmem, size = 0x10000, scoped, tag = 'input window, operand 1, single buffered']
    #allocation6 [shape = 's32[1]{0}', space=sflag, size = 0x4, scoped, tag = 'scoped memory for tpu_custom_call.1']
    #allocation7 [shape = 'u8[393216]{0}', space=vmem, size = 0x60000, scoped, tag = 'input window, operand 2, single buffered']
    #allocation8 [shape = 'u8[131072]{0}', space=vmem, size = 0x20000, scoped, tag = 'input window, operand 3, single buffered']
    #allocation9 [shape = 's32[1]{0}', space=sflag, size = 0x4, scoped, tag = 'scoped memory for tpu_custom_call.1']
    #allocation10 [shape = 'u8[4096]{0}', space=vmem, size = 0x1000, scoped, tag = 'input window, operand 4, single buffered']
    #allocation11 [shape = 'u8[32768]{0}', space=vmem, size = 0x8000, scoped, tag = 'output window, operand 0, single buffered']
    #allocation12 [shape = 'u8[32768]{0}', space=vmem, size = 0x8000, scoped, tag = 'output window, operand 1, single buffered']
    #allocation13 [shape = 's32[1]{0}', space=sflag, size = 0x4, scoped, tag = 'scoped memory for tpu_custom_call.1']
    %13 = vsyncpa [#allocation3], 0
    %14 = vsyncpa [#allocation6], 0
    %15 = vsyncpa [#allocation9], 0
    %16 = vsyncpa [#allocation4], 0
    %17 = vsyncpa [#allocation13], 0
    // Predicated region
    $region2: #{tpu_custom_call.1} parent=1 // pred_check
      _
    $region3: #{tpu_custom_call.1} parent=1 // pred_check_branch
      %19 = sbr.rel (0) target = $region5
    $region4: #{tpu_custom_call.1} parent=1 // pred_region
      %21 = vsyncadd [#allocation3], 0
      %s22 = sshll.u32 %s0, 4
      %s23 = int_to_ptr.hbm [resolvable:$true] %s22
      %s24 = sshll.u32 [#allocation2], 4
      %s25 = int_to_ptr.vmem [resolvable:$true] %s24
      %30 = dma.hbm_to_vmem [thread:$0]  %s23, 1024, %s25, [#allocation3], 128, 128, 8
    $region5: #{tpu_custom_call.1} parent=1 // pred_fallthru
      _
    // Predicated region
    $region6: #{tpu_custom_call.1} parent=1 // pred_check
      _
    $region7: #{tpu_custom_call.1} parent=1 // pred_check_branch
      %32 = sbr.rel (0) target = $region9
    $region8: #{tpu_custom_call.1} parent=1 // pred_region
      %34 = vsyncadd [#allocation6], 0
      %s35 = sshll.u32 %s1, 4
      %s36 = int_to_ptr.hbm [resolvable:$true] %s35
      %s37 = sshll.u32 [#allocation5], 4
      %s38 = int_to_ptr.vmem [resolvable:$true] %s37
      %43 = dma.hbm_to_vmem [thread:$0]  %s36, 2048, %s38, [#allocation6], 128, 128, 8
    $region9: #{tpu_custom_call.1} parent=1 // pred_fallthru
      _
    // Predicated region
    $region10: #{tpu_custom_call.1} parent=1 // pred_check
      _
    $region11: #{tpu_custom_call.1} parent=1 // pred_check_branch
      %45 = sbr.rel (0) target = $region13
    $region12: #{tpu_custom_call.1} parent=1 // pred_region
      %47 = vsyncadd [#allocation6], 0
      %s48 = sshll.u32 %s2, 4
      %s49 = int_to_ptr.hbm [resolvable:$true] %s48
      %s50 = sshll.u32 [#allocation7], 4
      %s51 = int_to_ptr.vmem [resolvable:$true] %s50
      %56 = dma.hbm_to_vmem [thread:$0]  %s49, 12288, %s51, [#allocation6], 128, 128, 8
    $region13: #{tpu_custom_call.1} parent=1 // pred_fallthru
      _
    // Predicated region
    $region14: #{tpu_custom_call.1} parent=1 // pred_check
      _
    $region15: #{tpu_custom_call.1} parent=1 // pred_check_branch
      %58 = sbr.rel (0) target = $region17
    $region16: #{tpu_custom_call.1} parent=1 // pred_region
      %60 = vsyncadd [#allocation9], 0
      %s61 = sshll.u32 %s3, 4
      %s62 = int_to_ptr.hbm [resolvable:$true] %s61
      %s63 = sshll.u32 [#allocation8], 4
      %s64 = int_to_ptr.vmem [resolvable:$true] %s63
      %69 = dma.hbm_to_vmem [thread:$0]  %s62, 4096, %s64, [#allocation9], 128, 128, 8
    $region17: #{tpu_custom_call.1} parent=1 // pred_fallthru
      _
    // Predicated region
    $region18: #{tpu_custom_call.1} parent=1 // pred_check
      _
    $region19: #{tpu_custom_call.1} parent=1 // pred_check_branch
      %71 = sbr.rel (0) target = $region21
    $region20: #{tpu_custom_call.1} parent=1 // pred_region
      %73 = vsyncadd [#allocation9], 0
      %s75 = sshll.u32 %s4, 4
      %s76 = int_to_ptr.hbm [resolvable:$true] %s75
      %s77 = sshll.u32 [#allocation10], 4
      %s78 = int_to_ptr.vmem [resolvable:$true] %s77
      %80 = dma.hbm_to_vmem [thread:$0]  %s76, 128, %s78, [#allocation9]
    $region21: #{tpu_custom_call.1} parent=1 // pred_fallthru
      _
    // Predicated region
    $region22: #{tpu_custom_call.1} parent=1 // pred_check
      _
    $region23: #{tpu_custom_call.1} parent=1 // pred_check_branch
      %82 = sbr.rel (0) target = $region25
    $region24: #{tpu_custom_call.1} parent=1 // pred_region
      _
    $region25: #{tpu_custom_call.1} parent=1 // pred_fallthru
      _
    // Predicated region
    $region26: #{tpu_custom_call.1} parent=1 // pred_check
      _
    $region27: #{tpu_custom_call.1} parent=1 // pred_check_branch
      %84 = sbr.rel (0) target = $region29
    $region28: #{tpu_custom_call.1} parent=1 // pred_region
      %86 = dma.done [#allocation3], 1024
    $region29: #{tpu_custom_call.1} parent=1 // pred_fallthru
      _
    // Predicated region
    $region30: #{tpu_custom_call.1} parent=1 // pred_check
      _
    $region31: #{tpu_custom_call.1} parent=1 // pred_check_branch
      %88 = sbr.rel (0) target = $region33
    $region32: #{tpu_custom_call.1} parent=1 // pred_region
      %90 = dma.done [#allocation6], 2048
    $region33: #{tpu_custom_call.1} parent=1 // pred_fallthru
      _
    // Predicated region
    $region34: #{tpu_custom_call.1} parent=1 // pred_check
      _
    $region35: #{tpu_custom_call.1} parent=1 // pred_check_branch
      %92 = sbr.rel (0) target = $region37
    $region36: #{tpu_custom_call.1} parent=1 // pred_region
      %94 = dma.done [#allocation6], 12288
    $region37: #{tpu_custom_call.1} parent=1 // pred_fallthru
      _
    // Predicated region
    $region38: #{tpu_custom_call.1} parent=1 // pred_check
      _
    $region39: #{tpu_custom_call.1} parent=1 // pred_check_branch
      %96 = sbr.rel (0) target = $region41
    $region40: #{tpu_custom_call.1} parent=1 // pred_region
      %98 = dma.done [#allocation9], 4096
    $region41: #{tpu_custom_call.1} parent=1 // pred_fallthru
      _
    // Predicated region
    $region42: #{tpu_custom_call.1} parent=1 // pred_check
      _
    $region43: #{tpu_custom_call.1} parent=1 // pred_check_branch
      %100 = sbr.rel (0) target = $region45
    $region44: #{tpu_custom_call.1} parent=1 // pred_region
      %102 = dma.done [#allocation9], 128
    $region45: #{tpu_custom_call.1} parent=1 // pred_fallthru
      _
    %v103 = vld [vmem:[#allocation2] sm:$0xff]
    %v104 = vld [vmem:[#allocation2 + $0x8] sm:$0xff]
    %v105 = vld [vmem:[#allocation2 + $0x10] sm:$0xff]
    %v106 = vld [vmem:[#allocation2 + $0x18] sm:$0xff]
    %v107 = vld [vmem:[#allocation2 + $0x20] sm:$0xff]
    %v108 = vld [vmem:[#allocation2 + $0x28] sm:$0xff]
    %v109 = vld [vmem:[#allocation2 + $0x30] sm:$0xff]
    %v110 = vld [vmem:[#allocation2 + $0x38] sm:$0xff]
    %v111 = vld [vmem:[#allocation5] sm:$0xff]
    %v112 = vld [vmem:[#allocation5 + $0x8] sm:$0xff]
    %v113 = vld [vmem:[#allocation5 + $0x10] sm:$0xff]
    %v114 = vld [vmem:[#allocation5 + $0x18] sm:$0xff]
    %v115 = vld [vmem:[#allocation5 + $0x20] sm:$0xff]
    %v116 = vld [vmem:[#allocation5 + $0x28] sm:$0xff]
    %v117 = vld [vmem:[#allocation5 + $0x30] sm:$0xff]
    %v118 = vld [vmem:[#allocation5 + $0x38] sm:$0xff]
    %v119 = vld [vmem:[#allocation5 + $0x40] sm:$0xff]
    %v120 = vld [vmem:[#allocation5 + $0x48] sm:$0xff]
    %v121 = vld [vmem:[#allocation5 + $0x50] sm:$0xff]
    %v122 = vld [vmem:[#allocation5 + $0x58] sm:$0xff]
    %v123 = vld [vmem:[#allocation5 + $0x60] sm:$0xff]
    %v124 = vld [vmem:[#allocation5 + $0x68] sm:$0xff]
    %v125 = vld [vmem:[#allocation5 + $0x70] sm:$0xff]
    %v126 = vld [vmem:[#allocation5 + $0x78] sm:$0xff]
    %v127 = vld [vmem:[#allocation10] sm:$0x1]
    %v128 = vperm.slane %v127, 0
    %129 = vmatpush.msra.mxu0 %v126
    %130 = vmatpush.msra.mxu0 %v125
    %131 = vmatpush.msra.mxu0 %v124
    %132 = vmatpush.msra.mxu0 %v123
    %133 = vmatpush.msra.mxu0 %v122
    %134 = vmatpush.msra.mxu0 %v121
    %135 = vmatpush.msra.mxu0 %v120
    %136 = vmatpush.msra.mxu0 %v119
    %137 = vmatpush.msra.mxu0 %v118
    %138 = vmatpush.msra.mxu0 %v117
    %139 = vmatpush.msra.mxu0 %v116
    %140 = vmatpush.msra.mxu0 %v115
    %141 = vmatpush.msra.mxu0 %v114
    %142 = vmatpush.msra.mxu0 %v113
    %143 = vmatpush.msra.mxu0 %v112
    %144 = vmatpush.msra.mxu0 %v111
    %145 = vmatmul.f32.gmra.mxu0 %v103
    %v146 = vpop.f32.mrf.mxu0
    %v147 = vadd.f32 %v128, %v146
    %148 = vmatmul.f32.gmra.mxu0 %v104
    %v149 = vpop.f32.mrf.mxu0
    %v150 = vadd.f32 %v128, %v149
    %151 = vmatmul.f32.gmra.mxu0 %v105
    %v152 = vpop.f32.mrf.mxu0
    %v153 = vadd.f32 %v128, %v152
    %154 = vmatmul.f32.gmra.mxu0 %v106
    %v155 = vpop.f32.mrf.mxu0
    %v156 = vadd.f32 %v128, %v155
    %157 = vmatmul.f32.gmra.mxu0 %v107
    %v158 = vpop.f32.mrf.mxu0
    %v159 = vadd.f32 %v128, %v158
    %160 = vmatmul.f32.gmra.mxu0 %v108
    %v161 = vpop.f32.mrf.mxu0
    %v162 = vadd.f32 %v128, %v161
    %163 = vmatmul.f32.gmra.mxu0 %v109
    %v164 = vpop.f32.mrf.mxu0
    %v165 = vadd.f32 %v128, %v164
    %166 = vmatmul.f32.gmra.mxu0 %v110
    %v167 = vpop.f32.mrf.mxu0
    %v168 = vadd.f32 %v128, %v167
    %169 = vdwg.mxu0
    %v170 = vmax.f32 %v147, 0.0
    %v171 = vmax.f32 %v150, 0.0
    %v172 = vmax.f32 %v153, 0.0
    %v173 = vmax.f32 %v156, 0.0
    %v174 = vmax.f32 %v159, 0.0
    %v175 = vmax.f32 %v162, 0.0
    %v176 = vmax.f32 %v165, 0.0
    %v177 = vmax.f32 %v168, 0.0
    %v178 = vld [vmem:[#allocation7] sm:$0xff]
    %v179 = vld [vmem:[#allocation7 + $0x8] sm:$0xff]
    %v180 = vld [vmem:[#allocation7 + $0x10] sm:$0xff]
    %v181 = vld [vmem:[#allocation7 + $0x18] sm:$0xff]
    %v182 = vld [vmem:[#allocation7 + $0x20] sm:$0xff]
    %v183 = vld [vmem:[#allocation7 + $0x28] sm:$0xff]
    %v184 = vld [vmem:[#allocation7 + $0x30] sm:$0xff]
    %v185 = vld [vmem:[#allocation7 + $0x38] sm:$0xff]
    %v186 = vld [vmem:[#allocation7 + $0x40] sm:$0xff]
    %v187 = vld [vmem:[#allocation7 + $0x48] sm:$0xff]
    %v188 = vld [vmem:[#allocation7 + $0x50] sm:$0xff]
    %v189 = vld [vmem:[#allocation7 + $0x58] sm:$0xff]
    %v190 = vld [vmem:[#allocation7 + $0x60] sm:$0xff]
    %v191 = vld [vmem:[#allocation7 + $0x68] sm:$0xff]
    %v192 = vld [vmem:[#allocation7 + $0x70] sm:$0xff]
    %v193 = vld [vmem:[#allocation7 + $0x78] sm:$0xff]
    %v194 = vld [vmem:[#allocation10 + $0x1] sm:$0x1]
    %v195 = vperm.slane %v194, 0
    %196 = vmatpush.msra.mxu0 %v193
    %197 = vmatpush.msra.mxu0 %v192
    %198 = vmatpush.msra.mxu0 %v191
    %199 = vmatpush.msra.mxu0 %v190
    %200 = vmatpush.msra.mxu0 %v189
    %201 = vmatpush.msra.mxu0 %v188
    %202 = vmatpush.msra.mxu0 %v187
    %203 = vmatpush.msra.mxu0 %v186
    %204 = vmatpush.msra.mxu0 %v185
    %205 = vmatpush.msra.mxu0 %v184
    %206 = vmatpush.msra.mxu0 %v183
    %207 = vmatpush.msra.mxu0 %v182
    %208 = vmatpush.msra.mxu0 %v181
    %209 = vmatpush.msra.mxu0 %v180
    %210 = vmatpush.msra.mxu0 %v179
    %211 = vmatpush.msra.mxu0 %v178
    %212 = vmatmul.f32.gmra.mxu0 %v170
    %v213 = vpop.f32.mrf.mxu0
    %v214 = vadd.f32 %v195, %v213
    %215 = vmatmul.f32.gmra.mxu0 %v171
    %v216 = vpop.f32.mrf.mxu0
    %v217 = vadd.f32 %v195, %v216
    %218 = vmatmul.f32.gmra.mxu0 %v172
    %v219 = vpop.f32.mrf.mxu0
    %v220 = vadd.f32 %v195, %v219
    %221 = vmatmul.f32.gmra.mxu0 %v173
    %v222 = vpop.f32.mrf.mxu0
    %v223 = vadd.f32 %v195, %v222
    %224 = vmatmul.f32.gmra.mxu0 %v174
    %v225 = vpop.f32.mrf.mxu0
    %v226 = vadd.f32 %v195, %v225
    %227 = vmatmul.f32.gmra.mxu0 %v175
    %v228 = vpop.f32.mrf.mxu0
    %v229 = vadd.f32 %v195, %v228
    %230 = vmatmul.f32.gmra.mxu0 %v176
    %v231 = vpop.f32.mrf.mxu0
    %v232 = vadd.f32 %v195, %v231
    %233 = vmatmul.f32.gmra.mxu0 %v177
    %v234 = vpop.f32.mrf.mxu0
    %v235 = vadd.f32 %v195, %v234
    %236 = vdwg.mxu0
    %v237 = vmax.f32 %v214, 0.0
    %v238 = vmax.f32 %v217, 0.0
    %v239 = vmax.f32 %v220, 0.0
    %v240 = vmax.f32 %v223, 0.0
    %v241 = vmax.f32 %v226, 0.0
    %v242 = vmax.f32 %v229, 0.0
    %v243 = vmax.f32 %v232, 0.0
    %v244 = vmax.f32 %v235, 0.0
    %s245 = scalar_lea.vmem [#allocation7], 128
    %v246 = vld [vmem:[%s245] sm:$0xff]
    %v247 = vld [vmem:[%s245 + $0x8] sm:$0xff]
    %v248 = vld [vmem:[%s245 + $0x10] sm:$0xff]
    %v249 = vld [vmem:[%s245 + $0x18] sm:$0xff]
    %v250 = vld [vmem:[%s245 + $0x20] sm:$0xff]
    %v251 = vld [vmem:[%s245 + $0x28] sm:$0xff]
    %v252 = vld [vmem:[%s245 + $0x30] sm:$0xff]
    %v253 = vld [vmem:[%s245 + $0x38] sm:$0xff]
    %v254 = vld [vmem:[%s245 + $0x40] sm:$0xff]
    %v255 = vld [vmem:[%s245 + $0x48] sm:$0xff]
    %v256 = vld [vmem:[%s245 + $0x50] sm:$0xff]
    %v257 = vld [vmem:[%s245 + $0x58] sm:$0xff]
    %v258 = vld [vmem:[%s245 + $0x60] sm:$0xff]
    %v259 = vld [vmem:[%s245 + $0x68] sm:$0xff]
    %v260 = vld [vmem:[%s245 + $0x70] sm:$0xff]
    %v261 = vld [vmem:[%s245 + $0x78] sm:$0xff]
    %v262 = vld [vmem:[#allocation10 + $0x2] sm:$0x1]
    %v263 = vperm.slane %v262, 0
    %264 = vmatpush.msra.mxu0 %v261
    %265 = vmatpush.msra.mxu0 %v260
    %266 = vmatpush.msra.mxu0 %v259
    %267 = vmatpush.msra.mxu0 %v258
    %268 = vmatpush.msra.mxu0 %v257
    %269 = vmatpush.msra.mxu0 %v256
    %270 = vmatpush.msra.mxu0 %v255
    %271 = vmatpush.msra.mxu0 %v254
    %272 = vmatpush.msra.mxu0 %v253
    %273 = vmatpush.msra.mxu0 %v252
    %274 = vmatpush.msra.mxu0 %v251
    %275 = vmatpush.msra.mxu0 %v250
    %276 = vmatpush.msra.mxu0 %v249
    %277 = vmatpush.msra.mxu0 %v248
    %278 = vmatpush.msra.mxu0 %v247
    %279 = vmatpush.msra.mxu0 %v246
    %280 = vmatmul.f32.gmra.mxu0 %v237
    %v281 = vpop.f32.mrf.mxu0
    %v282 = vadd.f32 %v263, %v281
    %283 = vmatmul.f32.gmra.mxu0 %v238
    %v284 = vpop.f32.mrf.mxu0
    %v285 = vadd.f32 %v263, %v284
    %286 = vmatmul.f32.gmra.mxu0 %v239
    %v287 = vpop.f32.mrf.mxu0
    %v288 = vadd.f32 %v263, %v287
    %289 = vmatmul.f32.gmra.mxu0 %v240
    %v290 = vpop.f32.mrf.mxu0
    %v291 = vadd.f32 %v263, %v290
    %292 = vmatmul.f32.gmra.mxu0 %v241
    %v293 = vpop.f32.mrf.mxu0
    %v294 = vadd.f32 %v263, %v293
    %295 = vmatmul.f32.gmra.mxu0 %v242
    %v296 = vpop.f32.mrf.mxu0
    %v297 = vadd.f32 %v263, %v296
    %298 = vmatmul.f32.gmra.mxu0 %v243
    %v299 = vpop.f32.mrf.mxu0
    %v300 = vadd.f32 %v263, %v299
    %301 = vmatmul.f32.gmra.mxu0 %v244
    %v302 = vpop.f32.mrf.mxu0
    %v303 = vadd.f32 %v263, %v302
    %304 = vdwg.mxu0
    %v305 = vmax.f32 %v282, 0.0
    %v306 = vmax.f32 %v285, 0.0
    %v307 = vmax.f32 %v288, 0.0
    %v308 = vmax.f32 %v291, 0.0
    %v309 = vmax.f32 %v294, 0.0
    %v310 = vmax.f32 %v297, 0.0
    %v311 = vmax.f32 %v300, 0.0
    %v312 = vmax.f32 %v303, 0.0
    %s313 = scalar_lea.vmem [#allocation7], 256
    %v314 = vld [vmem:[%s313] sm:$0xff]
    %v315 = vld [vmem:[%s313 + $0x8] sm:$0xff]
    %v316 = vld [vmem:[%s313 + $0x10] sm:$0xff]
    %v317 = vld [vmem:[%s313 + $0x18] sm:$0xff]
    %v318 = vld [vmem:[%s313 + $0x20] sm:$0xff]
    %v319 = vld [vmem:[%s313 + $0x28] sm:$0xff]
    %v320 = vld [vmem:[%s313 + $0x30] sm:$0xff]
    %v321 = vld [vmem:[%s313 + $0x38] sm:$0xff]
    %v322 = vld [vmem:[%s313 + $0x40] sm:$0xff]
    %v323 = vld [vmem:[%s313 + $0x48] sm:$0xff]
    %v324 = vld [vmem:[%s313 + $0x50] sm:$0xff]
    %v325 = vld [vmem:[%s313 + $0x58] sm:$0xff]
    %v326 = vld [vmem:[%s313 + $0x60] sm:$0xff]
    %v327 = vld [vmem:[%s313 + $0x68] sm:$0xff]
    %v328 = vld [vmem:[%s313 + $0x70] sm:$0xff]
    %v329 = vld [vmem:[%s313 + $0x78] sm:$0xff]
    %v330 = vld [vmem:[#allocation10 + $0x3] sm:$0x1]
    %v331 = vperm.slane %v330, 0
    %332 = vmatpush.msra.mxu0 %v329
    %333 = vmatpush.msra.mxu0 %v328
    %334 = vmatpush.msra.mxu0 %v327
    %335 = vmatpush.msra.mxu0 %v326
    %336 = vmatpush.msra.mxu0 %v325
    %337 = vmatpush.msra.mxu0 %v324
    %338 = vmatpush.msra.mxu0 %v323
    %339 = vmatpush.msra.mxu0 %v322
    %340 = vmatpush.msra.mxu0 %v321
    %341 = vmatpush.msra.mxu0 %v320
    %342 = vmatpush.msra.mxu0 %v319
    %343 = vmatpush.msra.mxu0 %v318
    %344 = vmatpush.msra.mxu0 %v317
    %345 = vmatpush.msra.mxu0 %v316
    %346 = vmatpush.msra.mxu0 %v315
    %347 = vmatpush.msra.mxu0 %v314
    %348 = vmatmul.f32.gmra.mxu0 %v305
    %v349 = vpop.f32.mrf.mxu0
    %v350 = vadd.f32 %v331, %v349
    %351 = vmatmul.f32.gmra.mxu0 %v306
    %v352 = vpop.f32.mrf.mxu0
    %v353 = vadd.f32 %v331, %v352
    %354 = vmatmul.f32.gmra.mxu0 %v307
    %v355 = vpop.f32.mrf.mxu0
    %v356 = vadd.f32 %v331, %v355
    %357 = vmatmul.f32.gmra.mxu0 %v308
    %v358 = vpop.f32.mrf.mxu0
    %v359 = vadd.f32 %v331, %v358
    %360 = vmatmul.f32.gmra.mxu0 %v309
    %v361 = vpop.f32.mrf.mxu0
    %v362 = vadd.f32 %v331, %v361
    %363 = vmatmul.f32.gmra.mxu0 %v310
    %v364 = vpop.f32.mrf.mxu0
    %v365 = vadd.f32 %v331, %v364
    %366 = vmatmul.f32.gmra.mxu0 %v311
    %v367 = vpop.f32.mrf.mxu0
    %v368 = vadd.f32 %v331, %v367
    %369 = vmatmul.f32.gmra.mxu0 %v312
    %v370 = vpop.f32.mrf.mxu0
    %v371 = vadd.f32 %v331, %v370
    %372 = vdwg.mxu0
    %v373 = vmax.f32 %v350, 0.0
    %v374 = vmax.f32 %v353, 0.0
    %v375 = vmax.f32 %v356, 0.0
    %v376 = vmax.f32 %v359, 0.0
    %v377 = vmax.f32 %v362, 0.0
    %v378 = vmax.f32 %v365, 0.0
    %v379 = vmax.f32 %v368, 0.0
    %v380 = vmax.f32 %v371, 0.0
    %s381 = scalar_lea.vmem [#allocation7], 384
    %v382 = vld [vmem:[%s381] sm:$0xff]
    %v383 = vld [vmem:[%s381 + $0x8] sm:$0xff]
    %v384 = vld [vmem:[%s381 + $0x10] sm:$0xff]
    %v385 = vld [vmem:[%s381 + $0x18] sm:$0xff]
    %v386 = vld [vmem:[%s381 + $0x20] sm:$0xff]
    %v387 = vld [vmem:[%s381 + $0x28] sm:$0xff]
    %v388 = vld [vmem:[%s381 + $0x30] sm:$0xff]
    %v389 = vld [vmem:[%s381 + $0x38] sm:$0xff]
    %v390 = vld [vmem:[%s381 + $0x40] sm:$0xff]
    %v391 = vld [vmem:[%s381 + $0x48] sm:$0xff]
    %v392 = vld [vmem:[%s381 + $0x50] sm:$0xff]
    %v393 = vld [vmem:[%s381 + $0x58] sm:$0xff]
    %v394 = vld [vmem:[%s381 + $0x60] sm:$0xff]
    %v395 = vld [vmem:[%s381 + $0x68] sm:$0xff]
    %v396 = vld [vmem:[%s381 + $0x70] sm:$0xff]
    %v397 = vld [vmem:[%s381 + $0x78] sm:$0xff]
    %v398 = vld [vmem:[#allocation10 + $0x4] sm:$0x1]
    %v399 = vperm.slane %v398, 0
    %400 = vmatpush.msra.mxu0 %v397
    %401 = vmatpush.msra.mxu0 %v396
    %402 = vmatpush.msra.mxu0 %v395
    %403 = vmatpush.msra.mxu0 %v394
    %404 = vmatpush.msra.mxu0 %v393
    %405 = vmatpush.msra.mxu0 %v392
    %406 = vmatpush.msra.mxu0 %v391
    %407 = vmatpush.msra.mxu0 %v390
    %408 = vmatpush.msra.mxu0 %v389
    %409 = vmatpush.msra.mxu0 %v388
    %410 = vmatpush.msra.mxu0 %v387
    %411 = vmatpush.msra.mxu0 %v386
    %412 = vmatpush.msra.mxu0 %v385
    %413 = vmatpush.msra.mxu0 %v384
    %414 = vmatpush.msra.mxu0 %v383
    %415 = vmatpush.msra.mxu0 %v382
    %416 = vmatmul.f32.gmra.mxu0 %v373
    %v417 = vpop.f32.mrf.mxu0
    %v418 = vadd.f32 %v399, %v417
    %419 = vmatmul.f32.gmra.mxu0 %v374
    %v420 = vpop.f32.mrf.mxu0
    %v421 = vadd.f32 %v399, %v420
    %422 = vmatmul.f32.gmra.mxu0 %v375
    %v423 = vpop.f32.mrf.mxu0
    %v424 = vadd.f32 %v399, %v423
    %425 = vmatmul.f32.gmra.mxu0 %v376
    %v426 = vpop.f32.mrf.mxu0
    %v427 = vadd.f32 %v399, %v426
    %428 = vmatmul.f32.gmra.mxu0 %v377
    %v429 = vpop.f32.mrf.mxu0
    %v430 = vadd.f32 %v399, %v429
    %431 = vmatmul.f32.gmra.mxu0 %v378
    %v432 = vpop.f32.mrf.mxu0
    %v433 = vadd.f32 %v399, %v432
    %434 = vmatmul.f32.gmra.mxu0 %v379
    %v435 = vpop.f32.mrf.mxu0
    %v436 = vadd.f32 %v399, %v435
    %437 = vmatmul.f32.gmra.mxu0 %v380
    %v438 = vpop.f32.mrf.mxu0
    %v439 = vadd.f32 %v399, %v438
    %440 = vdwg.mxu0
    %v441 = vmax.f32 %v418, 0.0
    %v442 = vmax.f32 %v421, 0.0
    %v443 = vmax.f32 %v424, 0.0
    %v444 = vmax.f32 %v427, 0.0
    %v445 = vmax.f32 %v430, 0.0
    %v446 = vmax.f32 %v433, 0.0
    %v447 = vmax.f32 %v436, 0.0
    %v448 = vmax.f32 %v439, 0.0
    %v449 = vld [vmem:[#allocation8] sm:$0xff]
    %v450 = vld [vmem:[#allocation8 + $0x8] sm:$0xff]
    %v451 = vld [vmem:[#allocation8 + $0x10] sm:$0xff]
    %v452 = vld [vmem:[#allocation8 + $0x18] sm:$0xff]
    %v453 = vld [vmem:[#allocation8 + $0x20] sm:$0xff]
    %v454 = vld [vmem:[#allocation8 + $0x28] sm:$0xff]
    %v455 = vld [vmem:[#allocation8 + $0x30] sm:$0xff]
    %v456 = vld [vmem:[#allocation8 + $0x38] sm:$0xff]
    %v457 = vld [vmem:[#allocation8 + $0x40] sm:$0xff]
    %v458 = vld [vmem:[#allocation8 + $0x48] sm:$0xff]
    %v459 = vld [vmem:[#allocation8 + $0x50] sm:$0xff]
    %v460 = vld [vmem:[#allocation8 + $0x58] sm:$0xff]
    %v461 = vld [vmem:[#allocation8 + $0x60] sm:$0xff]
    %v462 = vld [vmem:[#allocation8 + $0x68] sm:$0xff]
    %v463 = vld [vmem:[#allocation8 + $0x70] sm:$0xff]
    %v464 = vld [vmem:[#allocation8 + $0x78] sm:$0xff]
    %v465 = vld [vmem:[%s5] sm:$0x1]
    %v466 = vperm.slane %v465, 0
    %467 = vmatpush.msra.mxu0 %v464
    %468 = vmatpush.msra.mxu0 %v463
    %469 = vmatpush.msra.mxu0 %v462
    %470 = vmatpush.msra.mxu0 %v461
    %471 = vmatpush.msra.mxu0 %v460
    %472 = vmatpush.msra.mxu0 %v459
    %473 = vmatpush.msra.mxu0 %v458
    %474 = vmatpush.msra.mxu0 %v457
    %475 = vmatpush.msra.mxu0 %v456
    %476 = vmatpush.msra.mxu0 %v455
    %477 = vmatpush.msra.mxu0 %v454
    %478 = vmatpush.msra.mxu0 %v453
    %479 = vmatpush.msra.mxu0 %v452
    %480 = vmatpush.msra.mxu0 %v451
    %481 = vmatpush.msra.mxu0 %v450
    %482 = vmatpush.msra.mxu0 %v449
    %483 = vmatmul.f32.gmra.mxu0 %v441
    %v484 = vpop.f32.mrf.mxu0
    %v485 = vadd.f32 %v466, %v484
    %486 = vmatmul.f32.gmra.mxu0 %v442
    %v487 = vpop.f32.mrf.mxu0
    %v488 = vadd.f32 %v466, %v487
    %489 = vmatmul.f32.gmra.mxu0 %v443
    %v490 = vpop.f32.mrf.mxu0
    %v491 = vadd.f32 %v466, %v490
    %492 = vmatmul.f32.gmra.mxu0 %v444
    %v493 = vpop.f32.mrf.mxu0
    %v494 = vadd.f32 %v466, %v493
    %495 = vmatmul.f32.gmra.mxu0 %v445
    %v496 = vpop.f32.mrf.mxu0
    %v497 = vadd.f32 %v466, %v496
    %498 = vmatmul.f32.gmra.mxu0 %v446
    %v499 = vpop.f32.mrf.mxu0
    %v500 = vadd.f32 %v466, %v499
    %501 = vmatmul.f32.gmra.mxu0 %v447
    %v502 = vpop.f32.mrf.mxu0
    %v503 = vadd.f32 %v466, %v502
    %504 = vmatmul.f32.gmra.mxu0 %v448
    %v505 = vpop.f32.mrf.mxu0
    %v506 = vadd.f32 %v466, %v505
    %507 = vdwg.mxu0
    %v508 = vxor.u32 %v485, 2147483648
    %v509 = vxor.u32 %v488, 2147483648
    %v510 = vxor.u32 %v491, 2147483648
    %v511 = vxor.u32 %v494, 2147483648
    %v512 = vxor.u32 %v497, 2147483648
    %v513 = vxor.u32 %v500, 2147483648
    %v514 = vxor.u32 %v503, 2147483648
    %v515 = vxor.u32 %v506, 2147483648
    %v516 = vmul.f32 %v508, 1.442695
    %v517 = vpow.pop %v516
    %v518 = vmul.f32 %v509, 1.442695
    %v519 = vpow.pop %v518
    %v520 = vmul.f32 %v510, 1.442695
    %v521 = vpow.pop %v520
    %v522 = vmul.f32 %v511, 1.442695
    %v523 = vpow.pop %v522
    %v524 = vmul.f32 %v512, 1.442695
    %v525 = vpow.pop %v524
    %v526 = vmul.f32 %v513, 1.442695
    %v527 = vpow.pop %v526
    %v528 = vmul.f32 %v514, 1.442695
    %v529 = vpow.pop %v528
    %v530 = vmul.f32 %v515, 1.442695
    %v531 = vpow.pop %v530
    %v532 = vadd.f32 %v517, 1.0
    %v533 = vadd.f32 %v519, 1.0
    %v534 = vadd.f32 %v521, 1.0
    %v535 = vadd.f32 %v523, 1.0
    %v536 = vadd.f32 %v525, 1.0
    %v537 = vadd.f32 %v527, 1.0
    %v538 = vadd.f32 %v529, 1.0
    %v539 = vadd.f32 %v531, 1.0
    %v540 = vrcp.pop %v532
    %v541 = vmul.f32 %v532, %v540
    %v542 = vsub.f32 1.0, %v541
    %v543 = vmul.f32 %v540, %v542
    %v544 = vadd.f32 %v540, %v543
    %vm545 = vweird.f32 %v532
    %vm546 = vweird.f32 %v540
    %vm547 = vmor %vm545, %vm546
    %v548 = vsel %vm547, %v540, %v544
    %v549 = vand.u32 2147483647, %v532
    %vm550 = vcmp.eq.f32.partialorder %v549, 8.507059e+37
    %v551 = vand.u32 %v532, 2147483648
    %v552 = vor.u32 1.1754944e-38, %v551
    %v553 = vsel %vm550, %v552, %v548
    %v554 = vmul.f32 1.0, %v553
    %v555 = vrcp.pop %v533
    %v556 = vmul.f32 %v533, %v555
    %v557 = vsub.f32 1.0, %v556
    %v558 = vmul.f32 %v555, %v557
    %v559 = vadd.f32 %v555, %v558
    %vm560 = vweird.f32 %v533
    %vm561 = vweird.f32 %v555
    %vm562 = vmor %vm560, %vm561
    %v563 = vsel %vm562, %v555, %v559
    %v564 = vand.u32 2147483647, %v533
    %vm565 = vcmp.eq.f32.partialorder %v564, 8.507059e+37
    %v566 = vand.u32 %v533, 2147483648
    %v567 = vor.u32 1.1754944e-38, %v566
    %v568 = vsel %vm565, %v567, %v563
    %v569 = vmul.f32 1.0, %v568
    %v570 = vrcp.pop %v534
    %v571 = vmul.f32 %v534, %v570
    %v572 = vsub.f32 1.0, %v571
    %v573 = vmul.f32 %v570, %v572
    %v574 = vadd.f32 %v570, %v573
    %vm575 = vweird.f32 %v534
    %vm576 = vweird.f32 %v570
    %vm577 = vmor %vm575, %vm576
    %v578 = vsel %vm577, %v570, %v574
    %v579 = vand.u32 2147483647, %v534
    %vm580 = vcmp.eq.f32.partialorder %v579, 8.507059e+37
    %v581 = vand.u32 %v534, 2147483648
    %v582 = vor.u32 1.1754944e-38, %v581
    %v583 = vsel %vm580, %v582, %v578
    %v584 = vmul.f32 1.0, %v583
    %v585 = vrcp.pop %v535
    %v586 = vmul.f32 %v535, %v585
    %v587 = vsub.f32 1.0, %v586
    %v588 = vmul.f32 %v585, %v587
    %v589 = vadd.f32 %v585, %v588
    %vm590 = vweird.f32 %v535
    %vm591 = vweird.f32 %v585
    %vm592 = vmor %vm590, %vm591
    %v593 = vsel %vm592, %v585, %v589
    %v594 = vand.u32 2147483647, %v535
    %vm595 = vcmp.eq.f32.partialorder %v594, 8.507059e+37
    %v596 = vand.u32 %v535, 2147483648
    %v597 = vor.u32 1.1754944e-38, %v596
    %v598 = vsel %vm595, %v597, %v593
    %v599 = vmul.f32 1.0, %v598
    %v600 = vrcp.pop %v536
    %v601 = vmul.f32 %v536, %v600
    %v602 = vsub.f32 1.0, %v601
    %v603 = vmul.f32 %v600, %v602
    %v604 = vadd.f32 %v600, %v603
    %vm605 = vweird.f32 %v536
    %vm606 = vweird.f32 %v600
    %vm607 = vmor %vm605, %vm606
    %v608 = vsel %vm607, %v600, %v604
    %v609 = vand.u32 2147483647, %v536
    %vm610 = vcmp.eq.f32.partialorder %v609, 8.507059e+37
    %v611 = vand.u32 %v536, 2147483648
    %v612 = vor.u32 1.1754944e-38, %v611
    %v613 = vsel %vm610, %v612, %v608
    %v614 = vmul.f32 1.0, %v613
    %v615 = vrcp.pop %v537
    %v616 = vmul.f32 %v537, %v615
    %v617 = vsub.f32 1.0, %v616
    %v618 = vmul.f32 %v615, %v617
    %v619 = vadd.f32 %v615, %v618
    %vm620 = vweird.f32 %v537
    %vm621 = vweird.f32 %v615
    %vm622 = vmor %vm620, %vm621
    %v623 = vsel %vm622, %v615, %v619
    %v624 = vand.u32 2147483647, %v537
    %vm625 = vcmp.eq.f32.partialorder %v624, 8.507059e+37
    %v626 = vand.u32 %v537, 2147483648
    %v627 = vor.u32 1.1754944e-38, %v626
    %v628 = vsel %vm625, %v627, %v623
    %v629 = vmul.f32 1.0, %v628
    %v630 = vrcp.pop %v538
    %v631 = vmul.f32 %v538, %v630
    %v632 = vsub.f32 1.0, %v631
    %v633 = vmul.f32 %v630, %v632
    %v634 = vadd.f32 %v630, %v633
    %vm635 = vweird.f32 %v538
    %vm636 = vweird.f32 %v630
    %vm637 = vmor %vm635, %vm636
    %v638 = vsel %vm637, %v630, %v634
    %v639 = vand.u32 2147483647, %v538
    %vm640 = vcmp.eq.f32.partialorder %v639, 8.507059e+37
    %v641 = vand.u32 %v538, 2147483648
    %v642 = vor.u32 1.1754944e-38, %v641
    %v643 = vsel %vm640, %v642, %v638
    %v644 = vmul.f32 1.0, %v643
    %v645 = vrcp.pop %v539
    %v646 = vmul.f32 %v539, %v645
    %v647 = vsub.f32 1.0, %v646
    %v648 = vmul.f32 %v645, %v647
    %v649 = vadd.f32 %v645, %v648
    %vm650 = vweird.f32 %v539
    %vm651 = vweird.f32 %v645
    %vm652 = vmor %vm650, %vm651
    %v653 = vsel %vm652, %v645, %v649
    %v654 = vand.u32 2147483647, %v539
    %vm655 = vcmp.eq.f32.partialorder %v654, 8.507059e+37
    %v656 = vand.u32 %v539, 2147483648
    %v657 = vor.u32 1.1754944e-38, %v656
    %v658 = vsel %vm655, %v657, %v653
    %v659 = vmul.f32 1.0, %v658
    %660 = vmatpush.msra.mxu0 %v126
    %661 = vmatpush.msra.mxu0 %v125
    %662 = vmatpush.msra.mxu0 %v124
    %663 = vmatpush.msra.mxu0 %v123
    %664 = vmatpush.msra.mxu0 %v122
    %665 = vmatpush.msra.mxu0 %v121
    %666 = vmatpush.msra.mxu0 %v120
    %667 = vmatpush.msra.mxu0 %v119
    %668 = vmatpush.msra.mxu0 %v118
    %669 = vmatpush.msra.mxu0 %v117
    %670 = vmatpush.msra.mxu0 %v116
    %671 = vmatpush.msra.mxu0 %v115
    %672 = vmatpush.msra.mxu0 %v114
    %673 = vmatpush.msra.mxu0 %v113
    %674 = vmatpush.msra.mxu0 %v112
    %675 = vmatpush.msra.mxu0 %v111
    %676 = vmatmul.f32.gmra.mxu0 %v554
    %v677 = vpop.f32.mrf.mxu0
    %v678 = vadd.f32 %v128, %v677
    %679 = vmatmul.f32.gmra.mxu0 %v569
    %v680 = vpop.f32.mrf.mxu0
    %v681 = vadd.f32 %v128, %v680
    %682 = vmatmul.f32.gmra.mxu0 %v584
    %v683 = vpop.f32.mrf.mxu0
    %v684 = vadd.f32 %v128, %v683
    %685 = vmatmul.f32.gmra.mxu0 %v599
    %v686 = vpop.f32.mrf.mxu0
    %v687 = vadd.f32 %v128, %v686
    %688 = vmatmul.f32.gmra.mxu0 %v614
    %v689 = vpop.f32.mrf.mxu0
    %v690 = vadd.f32 %v128, %v689
    %691 = vmatmul.f32.gmra.mxu0 %v629
    %v692 = vpop.f32.mrf.mxu0
    %v693 = vadd.f32 %v128, %v692
    %694 = vmatmul.f32.gmra.mxu0 %v644
    %v695 = vpop.f32.mrf.mxu0
    %v696 = vadd.f32 %v128, %v695
    %697 = vmatmul.f32.gmra.mxu0 %v659
    %v698 = vpop.f32.mrf.mxu0
    %v699 = vadd.f32 %v128, %v698
    %700 = vdwg.mxu0
    %v701 = vmax.f32 %v678, 0.0
    %v702 = vmax.f32 %v681, 0.0
    %v703 = vmax.f32 %v684, 0.0
    %v704 = vmax.f32 %v687, 0.0
    %v705 = vmax.f32 %v690, 0.0
    %v706 = vmax.f32 %v693, 0.0
    %v707 = vmax.f32 %v696, 0.0
    %v708 = vmax.f32 %v699, 0.0
    %709 = vmatpush.msra.mxu0 %v193
    %710 = vmatpush.msra.mxu0 %v192
    %711 = vmatpush.msra.mxu0 %v191
    %712 = vmatpush.msra.mxu0 %v190
    %713 = vmatpush.msra.mxu0 %v189
    %714 = vmatpush.msra.mxu0 %v188
    %715 = vmatpush.msra.mxu0 %v187
    %716 = vmatpush.msra.mxu0 %v186
    %717 = vmatpush.msra.mxu0 %v185
    %718 = vmatpush.msra.mxu0 %v184
    %719 = vmatpush.msra.mxu0 %v183
    %720 = vmatpush.msra.mxu0 %v182
    %721 = vmatpush.msra.mxu0 %v181
    %722 = vmatpush.msra.mxu0 %v180
    %723 = vmatpush.msra.mxu0 %v179
    %724 = vmatpush.msra.mxu0 %v178
    %725 = vmatmul.f32.gmra.mxu0 %v701
    %v726 = vpop.f32.mrf.mxu0
    %v727 = vadd.f32 %v195, %v726
    %728 = vmatmul.f32.gmra.mxu0 %v702
    %v729 = vpop.f32.mrf.mxu0
    %v730 = vadd.f32 %v195, %v729
    %731 = vmatmul.f32.gmra.mxu0 %v703
    %v732 = vpop.f32.mrf.mxu0
    %v733 = vadd.f32 %v195, %v732
    %734 = vmatmul.f32.gmra.mxu0 %v704
    %v735 = vpop.f32.mrf.mxu0
    %v736 = vadd.f32 %v195, %v735
    %737 = vmatmul.f32.gmra.mxu0 %v705
    %v738 = vpop.f32.mrf.mxu0
    %v739 = vadd.f32 %v195, %v738
    %740 = vmatmul.f32.gmra.mxu0 %v706
    %v741 = vpop.f32.mrf.mxu0
    %v742 = vadd.f32 %v195, %v741
    %743 = vmatmul.f32.gmra.mxu0 %v707
    %v744 = vpop.f32.mrf.mxu0
    %v745 = vadd.f32 %v195, %v744
    %746 = vmatmul.f32.gmra.mxu0 %v708
    %v747 = vpop.f32.mrf.mxu0
    %v748 = vadd.f32 %v195, %v747
    %749 = vdwg.mxu0
    %v750 = vmax.f32 %v727, 0.0
    %v751 = vmax.f32 %v730, 0.0
    %v752 = vmax.f32 %v733, 0.0
    %v753 = vmax.f32 %v736, 0.0
    %v754 = vmax.f32 %v739, 0.0
    %v755 = vmax.f32 %v742, 0.0
    %v756 = vmax.f32 %v745, 0.0
    %v757 = vmax.f32 %v748, 0.0
    %758 = vmatpush.msra.mxu0 %v261
    %759 = vmatpush.msra.mxu0 %v260
    %760 = vmatpush.msra.mxu0 %v259
    %761 = vmatpush.msra.mxu0 %v258
    %762 = vmatpush.msra.mxu0 %v257
    %763 = vmatpush.msra.mxu0 %v256
    %764 = vmatpush.msra.mxu0 %v255
    %765 = vmatpush.msra.mxu0 %v254
    %766 = vmatpush.msra.mxu0 %v253
    %767 = vmatpush.msra.mxu0 %v252
    %768 = vmatpush.msra.mxu0 %v251
    %769 = vmatpush.msra.mxu0 %v250
    %770 = vmatpush.msra.mxu0 %v249
    %771 = vmatpush.msra.mxu0 %v248
    %772 = vmatpush.msra.mxu0 %v247
    %773 = vmatpush.msra.mxu0 %v246
    %774 = vmatmul.f32.gmra.mxu0 %v750
    %v775 = vpop.f32.mrf.mxu0
    %v776 = vadd.f32 %v263, %v775
    %777 = vmatmul.f32.gmra.mxu0 %v751
    %v778 = vpop.f32.mrf.mxu0
    %v779 = vadd.f32 %v263, %v778
    %780 = vmatmul.f32.gmra.mxu0 %v752
    %v781 = vpop.f32.mrf.mxu0
    %v782 = vadd.f32 %v263, %v781
    %783 = vmatmul.f32.gmra.mxu0 %v753
    %v784 = vpop.f32.mrf.mxu0
    %v785 = vadd.f32 %v263, %v784
    %786 = vmatmul.f32.gmra.mxu0 %v754
    %v787 = vpop.f32.mrf.mxu0
    %v788 = vadd.f32 %v263, %v787
    %789 = vmatmul.f32.gmra.mxu0 %v755
    %v790 = vpop.f32.mrf.mxu0
    %v791 = vadd.f32 %v263, %v790
    %792 = vmatmul.f32.gmra.mxu0 %v756
    %v793 = vpop.f32.mrf.mxu0
    %v794 = vadd.f32 %v263, %v793
    %795 = vmatmul.f32.gmra.mxu0 %v757
    %v796 = vpop.f32.mrf.mxu0
    %v797 = vadd.f32 %v263, %v796
    %798 = vdwg.mxu0
    %v799 = vmax.f32 %v776, 0.0
    %v800 = vmax.f32 %v779, 0.0
    %v801 = vmax.f32 %v782, 0.0
    %v802 = vmax.f32 %v785, 0.0
    %v803 = vmax.f32 %v788, 0.0
    %v804 = vmax.f32 %v791, 0.0
    %v805 = vmax.f32 %v794, 0.0
    %v806 = vmax.f32 %v797, 0.0
    %s807 = scalar_lea.vmem [#allocation7], 512
    %v808 = vld [vmem:[%s807] sm:$0xff]
    %v809 = vld [vmem:[%s807 + $0x8] sm:$0xff]
    %v810 = vld [vmem:[%s807 + $0x10] sm:$0xff]
    %v811 = vld [vmem:[%s807 + $0x18] sm:$0xff]
    %v812 = vld [vmem:[%s807 + $0x20] sm:$0xff]
    %v813 = vld [vmem:[%s807 + $0x28] sm:$0xff]
    %v814 = vld [vmem:[%s807 + $0x30] sm:$0xff]
    %v815 = vld [vmem:[%s807 + $0x38] sm:$0xff]
    %v816 = vld [vmem:[%s807 + $0x40] sm:$0xff]
    %v817 = vld [vmem:[%s807 + $0x48] sm:$0xff]
    %v818 = vld [vmem:[%s807 + $0x50] sm:$0xff]
    %v819 = vld [vmem:[%s807 + $0x58] sm:$0xff]
    %v820 = vld [vmem:[%s807 + $0x60] sm:$0xff]
    %v821 = vld [vmem:[%s807 + $0x68] sm:$0xff]
    %v822 = vld [vmem:[%s807 + $0x70] sm:$0xff]
    %v823 = vld [vmem:[%s807 + $0x78] sm:$0xff]
    %v824 = vld [vmem:[#allocation10 + $0x5] sm:$0x1]
    %v825 = vperm.slane %v824, 0
    %826 = vmatpush.msra.mxu0 %v823
    %827 = vmatpush.msra.mxu0 %v822
    %828 = vmatpush.msra.mxu0 %v821
    %829 = vmatpush.msra.mxu0 %v820
    %830 = vmatpush.msra.mxu0 %v819
    %831 = vmatpush.msra.mxu0 %v818
    %832 = vmatpush.msra.mxu0 %v817
    %833 = vmatpush.msra.mxu0 %v816
    %834 = vmatpush.msra.mxu0 %v815
    %835 = vmatpush.msra.mxu0 %v814
    %836 = vmatpush.msra.mxu0 %v813
    %837 = vmatpush.msra.mxu0 %v812
    %838 = vmatpush.msra.mxu0 %v811
    %839 = vmatpush.msra.mxu0 %v810
    %840 = vmatpush.msra.mxu0 %v809
    %841 = vmatpush.msra.mxu0 %v808
    %842 = vmatmul.f32.gmra.mxu0 %v799
    %v843 = vpop.f32.mrf.mxu0
    %v844 = vadd.f32 %v825, %v843
    %845 = vmatmul.f32.gmra.mxu0 %v800
    %v846 = vpop.f32.mrf.mxu0
    %v847 = vadd.f32 %v825, %v846
    %848 = vmatmul.f32.gmra.mxu0 %v801
    %v849 = vpop.f32.mrf.mxu0
    %v850 = vadd.f32 %v825, %v849
    %851 = vmatmul.f32.gmra.mxu0 %v802
    %v852 = vpop.f32.mrf.mxu0
    %v853 = vadd.f32 %v825, %v852
    %854 = vmatmul.f32.gmra.mxu0 %v803
    %v855 = vpop.f32.mrf.mxu0
    %v856 = vadd.f32 %v825, %v855
    %857 = vmatmul.f32.gmra.mxu0 %v804
    %v858 = vpop.f32.mrf.mxu0
    %v859 = vadd.f32 %v825, %v858
    %860 = vmatmul.f32.gmra.mxu0 %v805
    %v861 = vpop.f32.mrf.mxu0
    %v862 = vadd.f32 %v825, %v861
    %863 = vmatmul.f32.gmra.mxu0 %v806
    %v864 = vpop.f32.mrf.mxu0
    %v865 = vadd.f32 %v825, %v864
    %866 = vdwg.mxu0
    %v867 = vmax.f32 %v844, 0.0
    %v868 = vmax.f32 %v847, 0.0
    %v869 = vmax.f32 %v850, 0.0
    %v870 = vmax.f32 %v853, 0.0
    %v871 = vmax.f32 %v856, 0.0
    %v872 = vmax.f32 %v859, 0.0
    %v873 = vmax.f32 %v862, 0.0
    %v874 = vmax.f32 %v865, 0.0
    %s875 = scalar_lea.vmem [#allocation7], 640
    %v876 = vld [vmem:[%s875] sm:$0xff]
    %v877 = vld [vmem:[%s875 + $0x8] sm:$0xff]
    %v878 = vld [vmem:[%s875 + $0x10] sm:$0xff]
    %v879 = vld [vmem:[%s875 + $0x18] sm:$0xff]
    %v880 = vld [vmem:[%s875 + $0x20] sm:$0xff]
    %v881 = vld [vmem:[%s875 + $0x28] sm:$0xff]
    %v882 = vld [vmem:[%s875 + $0x30] sm:$0xff]
    %v883 = vld [vmem:[%s875 + $0x38] sm:$0xff]
    %v884 = vld [vmem:[%s875 + $0x40] sm:$0xff]
    %v885 = vld [vmem:[%s875 + $0x48] sm:$0xff]
    %v886 = vld [vmem:[%s875 + $0x50] sm:$0xff]
    %v887 = vld [vmem:[%s875 + $0x58] sm:$0xff]
    %v888 = vld [vmem:[%s875 + $0x60] sm:$0xff]
    %v889 = vld [vmem:[%s875 + $0x68] sm:$0xff]
    %v890 = vld [vmem:[%s875 + $0x70] sm:$0xff]
    %v891 = vld [vmem:[%s875 + $0x78] sm:$0xff]
    %v892 = vld [vmem:[#allocation10 + $0x6] sm:$0x1]
    %v893 = vperm.slane %v892, 0
    %894 = vmatpush.msra.mxu0 %v891
    %895 = vmatpush.msra.mxu0 %v890
    %896 = vmatpush.msra.mxu0 %v889
    %897 = vmatpush.msra.mxu0 %v888
    %898 = vmatpush.msra.mxu0 %v887
    %899 = vmatpush.msra.mxu0 %v886
    %900 = vmatpush.msra.mxu0 %v885
    %901 = vmatpush.msra.mxu0 %v884
    %902 = vmatpush.msra.mxu0 %v883
    %903 = vmatpush.msra.mxu0 %v882
    %904 = vmatpush.msra.mxu0 %v881
    %905 = vmatpush.msra.mxu0 %v880
    %906 = vmatpush.msra.mxu0 %v879
    %907 = vmatpush.msra.mxu0 %v878
    %908 = vmatpush.msra.mxu0 %v877
    %909 = vmatpush.msra.mxu0 %v876
    %910 = vmatmul.f32.gmra.mxu0 %v867
    %v911 = vpop.f32.mrf.mxu0
    %v912 = vadd.f32 %v893, %v911
    %913 = vmatmul.f32.gmra.mxu0 %v868
    %v914 = vpop.f32.mrf.mxu0
    %v915 = vadd.f32 %v893, %v914
    %916 = vmatmul.f32.gmra.mxu0 %v869
    %v917 = vpop.f32.mrf.mxu0
    %v918 = vadd.f32 %v893, %v917
    %919 = vmatmul.f32.gmra.mxu0 %v870
    %v920 = vpop.f32.mrf.mxu0
    %v921 = vadd.f32 %v893, %v920
    %922 = vmatmul.f32.gmra.mxu0 %v871
    %v923 = vpop.f32.mrf.mxu0
    %v924 = vadd.f32 %v893, %v923
    %925 = vmatmul.f32.gmra.mxu0 %v872
    %v926 = vpop.f32.mrf.mxu0
    %v927 = vadd.f32 %v893, %v926
    %928 = vmatmul.f32.gmra.mxu0 %v873
    %v929 = vpop.f32.mrf.mxu0
    %v930 = vadd.f32 %v893, %v929
    %931 = vmatmul.f32.gmra.mxu0 %v874
    %v932 = vpop.f32.mrf.mxu0
    %v933 = vadd.f32 %v893, %v932
    %934 = vdwg.mxu0
    %v935 = vmax.f32 %v912, 0.0
    %v936 = vmax.f32 %v915, 0.0
    %v937 = vmax.f32 %v918, 0.0
    %v938 = vmax.f32 %v921, 0.0
    %v939 = vmax.f32 %v924, 0.0
    %v940 = vmax.f32 %v927, 0.0
    %v941 = vmax.f32 %v930, 0.0
    %v942 = vmax.f32 %v933, 0.0
    %s943 = scalar_lea.vmem [#allocation8], 128
    %v944 = vld [vmem:[%s943] sm:$0xff]
    %v945 = vld [vmem:[%s943 + $0x8] sm:$0xff]
    %v946 = vld [vmem:[%s943 + $0x10] sm:$0xff]
    %v947 = vld [vmem:[%s943 + $0x18] sm:$0xff]
    %v948 = vld [vmem:[%s943 + $0x20] sm:$0xff]
    %v949 = vld [vmem:[%s943 + $0x28] sm:$0xff]
    %v950 = vld [vmem:[%s943 + $0x30] sm:$0xff]
    %v951 = vld [vmem:[%s943 + $0x38] sm:$0xff]
    %v952 = vld [vmem:[%s943 + $0x40] sm:$0xff]
    %v953 = vld [vmem:[%s943 + $0x48] sm:$0xff]
    %v954 = vld [vmem:[%s943 + $0x50] sm:$0xff]
    %v955 = vld [vmem:[%s943 + $0x58] sm:$0xff]
    %v956 = vld [vmem:[%s943 + $0x60] sm:$0xff]
    %v957 = vld [vmem:[%s943 + $0x68] sm:$0xff]
    %v958 = vld [vmem:[%s943 + $0x70] sm:$0xff]
    %v959 = vld [vmem:[%s943 + $0x78] sm:$0xff]
    %v960 = vld [vmem:[%s5 + $0x1] sm:$0x1]
    %v961 = vperm.slane %v960, 0
    %962 = vmatpush.msra.mxu0 %v959
    %963 = vmatpush.msra.mxu0 %v958
    %964 = vmatpush.msra.mxu0 %v957
    %965 = vmatpush.msra.mxu0 %v956
    %966 = vmatpush.msra.mxu0 %v955
    %967 = vmatpush.msra.mxu0 %v954
    %968 = vmatpush.msra.mxu0 %v953
    %969 = vmatpush.msra.mxu0 %v952
    %970 = vmatpush.msra.mxu0 %v951
    %971 = vmatpush.msra.mxu0 %v950
    %972 = vmatpush.msra.mxu0 %v949
    %973 = vmatpush.msra.mxu0 %v948
    %974 = vmatpush.msra.mxu0 %v947
    %975 = vmatpush.msra.mxu0 %v946
    %976 = vmatpush.msra.mxu0 %v945
    %977 = vmatpush.msra.mxu0 %v944
    %978 = vmatmul.f32.gmra.mxu0 %v935
    %v979 = vpop.f32.mrf.mxu0
    %v980 = vadd.f32 %v961, %v979
    %981 = vmatmul.f32.gmra.mxu0 %v936
    %v982 = vpop.f32.mrf.mxu0
    %v983 = vadd.f32 %v961, %v982
    %984 = vmatmul.f32.gmra.mxu0 %v937
    %v985 = vpop.f32.mrf.mxu0
    %v986 = vadd.f32 %v961, %v985
    %987 = vmatmul.f32.gmra.mxu0 %v938
    %v988 = vpop.f32.mrf.mxu0
    %v989 = vadd.f32 %v961, %v988
    %990 = vmatmul.f32.gmra.mxu0 %v939
    %v991 = vpop.f32.mrf.mxu0
    %v992 = vadd.f32 %v961, %v991
    %993 = vmatmul.f32.gmra.mxu0 %v940
    %v994 = vpop.f32.mrf.mxu0
    %v995 = vadd.f32 %v961, %v994
    %996 = vmatmul.f32.gmra.mxu0 %v941
    %v997 = vpop.f32.mrf.mxu0
    %v998 = vadd.f32 %v961, %v997
    %999 = vmatmul.f32.gmra.mxu0 %v942
    %v1000 = vpop.f32.mrf.mxu0
    %v1001 = vadd.f32 %v961, %v1000
    %1002 = vdwg.mxu0
    %v1003 = vxor.u32 %v980, 2147483648
    %v1004 = vxor.u32 %v983, 2147483648
    %v1005 = vxor.u32 %v986, 2147483648
    %v1006 = vxor.u32 %v989, 2147483648
    %v1007 = vxor.u32 %v992, 2147483648
    %v1008 = vxor.u32 %v995, 2147483648
    %v1009 = vxor.u32 %v998, 2147483648
    %v1010 = vxor.u32 %v1001, 2147483648
    %v1011 = vmul.f32 %v1003, 1.442695
    %v1012 = vpow.pop %v1011
    %v1013 = vmul.f32 %v1004, 1.442695
    %v1014 = vpow.pop %v1013
    %v1015 = vmul.f32 %v1005, 1.442695
    %v1016 = vpow.pop %v1015
    %v1017 = vmul.f32 %v1006, 1.442695
    %v1018 = vpow.pop %v1017
    %v1019 = vmul.f32 %v1007, 1.442695
    %v1020 = vpow.pop %v1019
    %v1021 = vmul.f32 %v1008, 1.442695
    %v1022 = vpow.pop %v1021
    %v1023 = vmul.f32 %v1009, 1.442695
    %v1024 = vpow.pop %v1023
    %v1025 = vmul.f32 %v1010, 1.442695
    %v1026 = vpow.pop %v1025
    %v1027 = vadd.f32 %v1012, 1.0
    %v1028 = vadd.f32 %v1014, 1.0
    %v1029 = vadd.f32 %v1016, 1.0
    %v1030 = vadd.f32 %v1018, 1.0
    %v1031 = vadd.f32 %v1020, 1.0
    %v1032 = vadd.f32 %v1022, 1.0
    %v1033 = vadd.f32 %v1024, 1.0
    %v1034 = vadd.f32 %v1026, 1.0
    %v1035 = vrcp.pop %v1027
    %v1036 = vmul.f32 %v1027, %v1035
    %v1037 = vsub.f32 1.0, %v1036
    %v1038 = vmul.f32 %v1035, %v1037
    %v1039 = vadd.f32 %v1035, %v1038
    %vm1040 = vweird.f32 %v1027
    %vm1041 = vweird.f32 %v1035
    %vm1042 = vmor %vm1040, %vm1041
    %v1043 = vsel %vm1042, %v1035, %v1039
    %v1044 = vand.u32 2147483647, %v1027
    %vm1045 = vcmp.eq.f32.partialorder %v1044, 8.507059e+37
    %v1046 = vand.u32 %v1027, 2147483648
    %v1047 = vor.u32 1.1754944e-38, %v1046
    %v1048 = vsel %vm1045, %v1047, %v1043
    %v1049 = vmul.f32 1.0, %v1048
    %v1050 = vrcp.pop %v1028
    %v1051 = vmul.f32 %v1028, %v1050
    %v1052 = vsub.f32 1.0, %v1051
    %v1053 = vmul.f32 %v1050, %v1052
    %v1054 = vadd.f32 %v1050, %v1053
    %vm1055 = vweird.f32 %v1028
    %vm1056 = vweird.f32 %v1050
    %vm1057 = vmor %vm1055, %vm1056
    %v1058 = vsel %vm1057, %v1050, %v1054
    %v1059 = vand.u32 2147483647, %v1028
    %vm1060 = vcmp.eq.f32.partialorder %v1059, 8.507059e+37
    %v1061 = vand.u32 %v1028, 2147483648
    %v1062 = vor.u32 1.1754944e-38, %v1061
    %v1063 = vsel %vm1060, %v1062, %v1058
    %v1064 = vmul.f32 1.0, %v1063
    %v1065 = vrcp.pop %v1029
    %v1066 = vmul.f32 %v1029, %v1065
    %v1067 = vsub.f32 1.0, %v1066
    %v1068 = vmul.f32 %v1065, %v1067
    %v1069 = vadd.f32 %v1065, %v1068
    %vm1070 = vweird.f32 %v1029
    %vm1071 = vweird.f32 %v1065
    %vm1072 = vmor %vm1070, %vm1071
    %v1073 = vsel %vm1072, %v1065, %v1069
    %v1074 = vand.u32 2147483647, %v1029
    %vm1075 = vcmp.eq.f32.partialorder %v1074, 8.507059e+37
    %v1076 = vand.u32 %v1029, 2147483648
    %v1077 = vor.u32 1.1754944e-38, %v1076
    %v1078 = vsel %vm1075, %v1077, %v1073
    %v1079 = vmul.f32 1.0, %v1078
    %v1080 = vrcp.pop %v1030
    %v1081 = vmul.f32 %v1030, %v1080
    %v1082 = vsub.f32 1.0, %v1081
    %v1083 = vmul.f32 %v1080, %v1082
    %v1084 = vadd.f32 %v1080, %v1083
    %vm1085 = vweird.f32 %v1030
    %vm1086 = vweird.f32 %v1080
    %vm1087 = vmor %vm1085, %vm1086
    %v1088 = vsel %vm1087, %v1080, %v1084
    %v1089 = vand.u32 2147483647, %v1030
    %vm1090 = vcmp.eq.f32.partialorder %v1089, 8.507059e+37
    %v1091 = vand.u32 %v1030, 2147483648
    %v1092 = vor.u32 1.1754944e-38, %v1091
    %v1093 = vsel %vm1090, %v1092, %v1088
    %v1094 = vmul.f32 1.0, %v1093
    %v1095 = vrcp.pop %v1031
    %v1096 = vmul.f32 %v1031, %v1095
    %v1097 = vsub.f32 1.0, %v1096
    %v1098 = vmul.f32 %v1095, %v1097
    %v1099 = vadd.f32 %v1095, %v1098
    %vm1100 = vweird.f32 %v1031
    %vm1101 = vweird.f32 %v1095
    %vm1102 = vmor %vm1100, %vm1101
    %v1103 = vsel %vm1102, %v1095, %v1099
    %v1104 = vand.u32 2147483647, %v1031
    %vm1105 = vcmp.eq.f32.partialorder %v1104, 8.507059e+37
    %v1106 = vand.u32 %v1031, 2147483648
    %v1107 = vor.u32 1.1754944e-38, %v1106
    %v1108 = vsel %vm1105, %v1107, %v1103
    %v1109 = vmul.f32 1.0, %v1108
    %v1110 = vrcp.pop %v1032
    %v1111 = vmul.f32 %v1032, %v1110
    %v1112 = vsub.f32 1.0, %v1111
    %v1113 = vmul.f32 %v1110, %v1112
    %v1114 = vadd.f32 %v1110, %v1113
    %vm1115 = vweird.f32 %v1032
    %vm1116 = vweird.f32 %v1110
    %vm1117 = vmor %vm1115, %vm1116
    %v1118 = vsel %vm1117, %v1110, %v1114
    %v1119 = vand.u32 2147483647, %v1032
    %vm1120 = vcmp.eq.f32.partialorder %v1119, 8.507059e+37
    %v1121 = vand.u32 %v1032, 2147483648
    %v1122 = vor.u32 1.1754944e-38, %v1121
    %v1123 = vsel %vm1120, %v1122, %v1118
    %v1124 = vmul.f32 1.0, %v1123
    %v1125 = vrcp.pop %v1033
    %v1126 = vmul.f32 %v1033, %v1125
    %v1127 = vsub.f32 1.0, %v1126
    %v1128 = vmul.f32 %v1125, %v1127
    %v1129 = vadd.f32 %v1125, %v1128
    %vm1130 = vweird.f32 %v1033
    %vm1131 = vweird.f32 %v1125
    %vm1132 = vmor %vm1130, %vm1131
    %v1133 = vsel %vm1132, %v1125, %v1129
    %v1134 = vand.u32 2147483647, %v1033
    %vm1135 = vcmp.eq.f32.partialorder %v1134, 8.507059e+37
    %v1136 = vand.u32 %v1033, 2147483648
    %v1137 = vor.u32 1.1754944e-38, %v1136
    %v1138 = vsel %vm1135, %v1137, %v1133
    %v1139 = vmul.f32 1.0, %v1138
    %v1140 = vrcp.pop %v1034
    %v1141 = vmul.f32 %v1034, %v1140
    %v1142 = vsub.f32 1.0, %v1141
    %v1143 = vmul.f32 %v1140, %v1142
    %v1144 = vadd.f32 %v1140, %v1143
    %vm1145 = vweird.f32 %v1034
    %vm1146 = vweird.f32 %v1140
    %vm1147 = vmor %vm1145, %vm1146
    %v1148 = vsel %vm1147, %v1140, %v1144
    %v1149 = vand.u32 2147483647, %v1034
    %vm1150 = vcmp.eq.f32.partialorder %v1149, 8.507059e+37
    %v1151 = vand.u32 %v1034, 2147483648
    %v1152 = vor.u32 1.1754944e-38, %v1151
    %v1153 = vsel %vm1150, %v1152, %v1148
    %v1154 = vmul.f32 1.0, %v1153
    %1155 = vst [vmem:[#allocation11] sm:$0xff] %v554
    %1156 = vst [vmem:[#allocation11 + $0x8] sm:$0xff] %v569
    %1157 = vst [vmem:[#allocation11 + $0x10] sm:$0xff] %v584
    %1158 = vst [vmem:[#allocation11 + $0x18] sm:$0xff] %v599
    %1159 = vst [vmem:[#allocation11 + $0x20] sm:$0xff] %v614
    %1160 = vst [vmem:[#allocation11 + $0x28] sm:$0xff] %v629
    %1161 = vst [vmem:[#allocation11 + $0x30] sm:$0xff] %v644
    %1162 = vst [vmem:[#allocation11 + $0x38] sm:$0xff] %v659
    %1163 = vst [vmem:[#allocation12] sm:$0xff] %v1049
    %1164 = vst [vmem:[#allocation12 + $0x8] sm:$0xff] %v1064
    %1165 = vst [vmem:[#allocation12 + $0x10] sm:$0xff] %v1079
    %1166 = vst [vmem:[#allocation12 + $0x18] sm:$0xff] %v1094
    %1167 = vst [vmem:[#allocation12 + $0x20] sm:$0xff] %v1109
    %1168 = vst [vmem:[#allocation12 + $0x28] sm:$0xff] %v1124
    %1169 = vst [vmem:[#allocation12 + $0x30] sm:$0xff] %v1139
    %1170 = vst [vmem:[#allocation12 + $0x38] sm:$0xff] %v1154
    // Predicated region
    $region46: #{tpu_custom_call.1} parent=1 // pred_check
      _
    $region47: #{tpu_custom_call.1} parent=1 // pred_check_branch
      %1172 = sbr.rel (0) target = $region49
    $region48: #{tpu_custom_call.1} parent=1 // pred_region
      %1174 = vsyncadd [#allocation4], 0
      %s1175 = sshll.u32 [#allocation11], 4
      %s1176 = int_to_ptr.vmem [resolvable:$true] %s1175
      %s1177 = sshll.u32 %s6, 4
      %s1178 = int_to_ptr.hbm [resolvable:$true] %s1177
      %1183 = dma.vmem_to_hbm [thread:$0]  %s1176, 1024, %s1178, [#allocation4], 128, 128, 8
    $region49: #{tpu_custom_call.1} parent=1 // pred_fallthru
      _
    // Predicated region
    $region50: #{tpu_custom_call.1} parent=1 // pred_check
      _
    $region51: #{tpu_custom_call.1} parent=1 // pred_check_branch
      %1185 = sbr.rel (0) target = $region53
    $region52: #{tpu_custom_call.1} parent=1 // pred_region
      %1187 = vsyncadd [#allocation13], 0
      %s1188 = sshll.u32 [#allocation12], 4
      %s1189 = int_to_ptr.vmem [resolvable:$true] %s1188
      %s1190 = sshll.u32 %s7, 4
      %s1191 = int_to_ptr.hbm [resolvable:$true] %s1190
      %1196 = dma.vmem_to_hbm [thread:$0]  %s1189, 1024, %s1191, [#allocation13], 128, 128, 8
    $region53: #{tpu_custom_call.1} parent=1 // pred_fallthru
      _
    // Predicated region
    $region54: #{tpu_custom_call.1} parent=1 // pred_check
      _
    $region55: #{tpu_custom_call.1} parent=1 // pred_check_branch
      %1198 = sbr.rel (0) target = $region57
    $region56: #{tpu_custom_call.1} parent=1 // pred_region
      %1200 = dma.done [#allocation4], 1024
    $region57: #{tpu_custom_call.1} parent=1 // pred_fallthru
      _
    // Predicated region
    $region58: #{tpu_custom_call.1} parent=1 // pred_check
      _
    $region59: #{tpu_custom_call.1} parent=1 // pred_check_branch
      %1202 = sbr.rel (0) target = $region61
    $region60: #{tpu_custom_call.1} parent=1 // pred_region
      %1204 = dma.done [#allocation13], 1024
    $region61: #{tpu_custom_call.1} parent=1 // pred_fallthru
      _
    %1205 = vsyncpa [#allocation3], 1
    %1206 = vsyncpa [#allocation6], 1
    %1207 = vsyncpa [#allocation9], 1
    %1208 = vsyncpa [#allocation4], 1
    %1209 = vsyncpa [#allocation13], 1

</llo_original>
